<compile_context>
chip_gen: v7x
topology: tpu7x:2x2x1
jax: 0.10.0
libtpu: 0.0.40
codegen_flags: <defaults>
</compile_context>

<pallas_src>
import jax
import jax.numpy as jnp
from jax.experimental import pallas as pl
from jax.experimental.pallas import tpu as pltpu


# Packed-weight layout indices.
LIN1, LIN2, CONV1, CONV2, CONV3, MLP1, MLP2 = range(7)


# ------------------------------ fused kernel ------------------------------- #

def gine_net_kernel(x_ref, ea_ref, g_ref, s_ref, p_ref, w_ref, b_ref, o_ref):
    fp = w_ref.shape[1]            # padded feature/lane width (128); weights are
                                   # stacked [7*fp, fp] bf16, biases [8, fp] f32.

    def lin(h, idx):
        # bf16 MXU operands, f32 accumulation, f32 bias add.
        w = w_ref[pl.ds(idx * fp, fp), :]                      # static slice, bf16
        b = b_ref[pl.ds(idx, 1), :]                            # [1, fp] f32
        return jnp.dot(h.astype(jnp.bfloat16), w,
                       preferred_element_type=jnp.float32) + b

    def gine(h, ea, idx, relu):
        # gather x_j per edge (bf16 MXU), f32 message, scatter-add (bf16 MXU).
        # g_ref / s_ref are re-read here (bf16) rather than hoisted as f32 values.
        xj = jnp.dot(g_ref[...], h.astype(jnp.bfloat16),
                     preferred_element_type=jnp.float32)        # [EP, FP] f32
        msg = jnp.maximum(xj + ea, 0.0)                         # f32 VPU
        aggr = jnp.dot(s_ref[...], msg.astype(jnp.bfloat16),
                       preferred_element_type=jnp.float32)      # [NP, FP] f32
        out = lin(h + aggr, idx)                                # eps == 0
        return jnp.maximum(out, 0.0) if relu else out

    x = x_ref[...]                                              # [NP, FP] f32
    ea = lin(ea_ref[...], LIN1)                                 # edge_attr = lin1(ea)
    h = gine(x, ea, CONV1, True)                                # x = relu(conv1)
    # F.dropout -> no-op (eval)
    ea = lin(ea, LIN2)                                          # edge_attr = lin2(ea)
    h = gine(h, ea, CONV2, True)                                # x = relu(conv2)
    h = gine(h, ea, CONV3, False)                               # x = conv3
    # scatter_mean pooling (1/count folded into P) + 2-layer MLP head
    pooled = jnp.dot(p_ref[...], h, preferred_element_type=jnp.float32)  # [GP, FP]
    hid = jnp.maximum(lin(pooled, MLP1), 0.0)
    o_ref[...] = lin(hid, MLP2).astype(o_ref.dtype)


# -------------------------------- wrapper ----------------------------------- #

def _vmem_full_spec(a):
    nd = a.ndim
    return pl.BlockSpec(a.shape, lambda i, _nd=nd: (0,) * _nd)


def gine_net_forward(x_p, ea_p, G, S, P, W_pk, B_pk):
    """Single fused pallas_call; returns padded [GP, FP] output."""
    inputs = (x_p, ea_p, G, S, P, W_pk, B_pk)
    NP_, FP = x_p.shape
    EP_ = ea_p.shape[0]
    GP = P.shape[0]

    matmul_flops = 2 * (
        2 * EP_ * FP * FP                                        # lin1, lin2
        + 3 * (EP_ * NP_ * FP + NP_ * EP_ * FP + NP_ * FP * FP)  # 3x GINE layers
        + GP * NP_ * FP + 2 * GP * FP * FP                       # pool + MLP head
    )
    bytes_accessed = int(sum(int(a.size) * a.dtype.itemsize for a in inputs)
                         + GP * FP * 4)

    return pl.pallas_call(
        gine_net_kernel,
        grid=(1,),
        in_specs=[_vmem_full_spec(a) for a in inputs],
        out_specs=pl.BlockSpec((GP, FP), lambda i: (0, 0)),
        out_shape=jax.ShapeDtypeStruct((GP, FP), jnp.float32),
        compiler_params=pltpu.CompilerParams(dimension_semantics=("arbitrary",)),
        cost_estimate=pl.CostEstimate(
            flops=matmul_flops, transcendentals=0, bytes_accessed=bytes_accessed),
    )(*inputs)


# ------------------------- parameter construction --------------------------- #

def make_linear_params(key, in_dim, out_dim):
    # torch.nn.Linear default init: U(-1/sqrt(in), 1/sqrt(in)); stored as [in, out]
    k1, k2 = jax.random.split(key)
    bound = 1.0 / jnp.sqrt(in_dim)
    w = jax.random.uniform(k1, (in_dim, out_dim), jnp.float32, -bound, bound)
    b = jax.random.uniform(k2, (out_dim,), jnp.float32, -bound, bound)
    return w, b


def pack_params(raw_params, order, fp):
    """Pack 7 weight mats into one bf16 [7*fp, fp] array and biases into f32 [8, fp]."""
    w_blocks, b_rows = [], []
    for name in order:
        w, b = raw_params[name]
        wp = jnp.zeros((fp, fp), jnp.float32).at[:w.shape[0], :w.shape[1]].set(w)
        bp = jnp.zeros((fp,), jnp.float32).at[:b.shape[0]].set(b)
        w_blocks.append(wp)
        b_rows.append(bp)
    W_pk = jnp.concatenate(w_blocks, axis=0).astype(jnp.bfloat16)      # [7*fp, fp]
    B_pk = jnp.zeros((8, fp), jnp.float32).at[:7, :].set(jnp.stack(b_rows))
    return W_pk, B_pk


# --------------------------- pure-JAX reference ------------------------------ #

def reference_forward(params, x, edge_attr, src, dst, batch, num_graphs):
    def lin(h, wb):
        return h @ wb[0] + wb[1]

    def gine(h, ea, wb, relu):
        msg = jnp.maximum(h[src] + ea, 0.0)
        aggr = jax.ops.segment_sum(msg, dst, num_segments=h.shape[0])
        out = lin(h + aggr, wb)
        return jnp.maximum(out, 0.0) if relu else out

    ea = lin(edge_attr, params["lin1"])
    h = gine(x, ea, params["conv1"], True)
    ea = lin(ea, params["lin2"])
    h = gine(h, ea, params["conv2"], True)
    h = gine(h, ea, params["conv3"], False)
    sums = jax.ops.segment_sum(h, batch, num_segments=num_graphs)
    cnts = jax.ops.segment_sum(jnp.ones_like(batch, jnp.float32), batch,
                               num_segments=num_graphs)
    pooled = sums / cnts[:, None]
    hid = jnp.maximum(lin(pooled, params["mlp_l1"]), 0.0)
    return lin(hid, params["mlp_l2"])


# ---------------------------------- main ------------------------------------- #

if __name__ == "__main__":
    N, E = 16, 32                       # nodes, edges
    NNF, NEF = 8, 6                     # num_node_features, num_edge_features
    HIDDEN, TASKS, NGRAPH = 32, 4, 2
    NP, EP, FP, GP = 16, 32, 128, 8     # padded node/edge/feature/graph dims

    root = jax.random.PRNGKey(0)
    keys = jax.random.split(root, 12)

    # graph data (unpadded, used by the reference)
    x = jax.random.normal(keys[0], (N, NNF), jnp.float32)
    edge_attr = jax.random.normal(keys[1], (E, NEF), jnp.float32)
    src = jax.random.randint(keys[2], (E,), 0, N)
    dst = jax.random.randint(keys[3], (E,), 0, N)
    batch = jnp.concatenate([jnp.zeros(N // 2, jnp.int32),
                             jnp.ones(N - N // 2, jnp.int32)])

    # ---- padded, lane-dense kernel operands -------------------------------- #
    x_p = jnp.zeros((NP, FP), jnp.float32).at[:N, :NNF].set(x)
    ea_p = jnp.zeros((EP, FP), jnp.float32).at[:E, :NEF].set(edge_attr)

    # out-of-range index (== NP) produces an all-zero one-hot row, so padded
    # edges (if any) neither gather nor scatter anything.
    src_p = jnp.full((EP,), NP, jnp.int32).at[:E].set(src)
    dst_p = jnp.full((EP,), NP, jnp.int32).at[:E].set(dst)
    G = jax.nn.one_hot(src_p, NP, dtype=jnp.bfloat16)        # [EP, NP] gather x_j
    S = jax.nn.one_hot(dst_p, NP, dtype=jnp.bfloat16).T      # [NP, EP] scatter-add

    counts = jnp.maximum(
        jax.ops.segment_sum(jnp.ones((N,), jnp.float32), batch, num_segments=NGRAPH),
        1.0)
    P_real = jax.nn.one_hot(batch, NGRAPH, dtype=jnp.float32).T / counts[:, None]
    P = jnp.zeros((GP, NP), jnp.float32).at[:NGRAPH, :N].set(P_real)   # [GP, NP]

    # parameters (deterministic, synthetic)
    raw_params = {
        "lin1":   make_linear_params(keys[4], NEF, NNF),
        "lin2":   make_linear_params(keys[5], NNF, HIDDEN),
        "conv1":  make_linear_params(keys[6], NNF, HIDDEN),
        "conv2":  make_linear_params(keys[7], HIDDEN, HIDDEN),
        "conv3":  make_linear_params(keys[8], HIDDEN, HIDDEN),
        "mlp_l1": make_linear_params(keys[9], HIDDEN, HIDDEN),
        "mlp_l2": make_linear_params(keys[10], HIDDEN, TASKS),
    }
    order = ("lin1", "lin2", "conv1", "conv2", "conv3", "mlp_l1", "mlp_l2")
    W_pk, B_pk = pack_params(raw_params, order, FP)

    out_padded = gine_net_forward(x_p, ea_p, G, S, P, W_pk, B_pk)
    out_padded = jax.block_until_ready(out_padded)
    out = out_padded[:NGRAPH, :TASKS]

    ref = reference_forward(raw_params, x, edge_attr, src, dst, batch, NGRAPH)
    assert out.shape == (NGRAPH, TASKS), out.shape
    # bf16 weights / bf16 MXU operands (f32 accumulation) => loosened tolerance
    # vs. the pure-f32 reference, per the perf review's correctness note.
    assert jnp.allclose(out, ref, rtol=5e-2, atol=5e-2), (out, ref)

    print("KERNEL_OK")
</pallas_src>

<mosaic_0001>
module attributes {stable_mosaic.version = 11 : i64} {
  func.func @gine_net_kernel(%arg0: i32, %arg1: memref<16x128xf32, #tpu.memory_space<vmem>>, %arg2: memref<32x128xf32, #tpu.memory_space<vmem>>, %arg3: memref<32x16xbf16, #tpu.memory_space<vmem>>, %arg4: memref<16x32xbf16, #tpu.memory_space<vmem>>, %arg5: memref<8x16xf32, #tpu.memory_space<vmem>>, %arg6: memref<896x128xbf16, #tpu.memory_space<vmem>>, %arg7: memref<8x128xf32, #tpu.memory_space<vmem>>, %arg8: memref<8x128xf32, #tpu.memory_space<vmem>>) attributes {dimension_semantics = [#tpu.dimension_semantics<arbitrary>], iteration_bounds = array<i64: 1>, scalar_prefetch = 0 : i64, scratch_operands = 0 : i64, tpu.core_type = #tpu.core_type<tc>, window_params = [{pipeline_mode = #tpu.pipeline_mode<synchronous>, transform_indices = @transform_0, window_bounds = array<i64: 16, 128>}, {pipeline_mode = #tpu.pipeline_mode<synchronous>, transform_indices = @transform_1, window_bounds = array<i64: 32, 128>}, {pipeline_mode = #tpu.pipeline_mode<synchronous>, transform_indices = @transform_2, window_bounds = array<i64: 32, 16>}, {pipeline_mode = #tpu.pipeline_mode<synchronous>, transform_indices = @transform_3, window_bounds = array<i64: 16, 32>}, {pipeline_mode = #tpu.pipeline_mode<synchronous>, transform_indices = @transform_4, window_bounds = array<i64: 8, 16>}, {pipeline_mode = #tpu.pipeline_mode<synchronous>, transform_indices = @transform_5, window_bounds = array<i64: 896, 128>}, {pipeline_mode = #tpu.pipeline_mode<synchronous>, transform_indices = @transform_6, window_bounds = array<i64: 8, 128>}, {pipeline_mode = #tpu.pipeline_mode<synchronous>, transform_indices = @transform_7, window_bounds = array<i64: 8, 128>}]} {
    %c0 = arith.constant 0 : index
    %c0_0 = arith.constant 0 : index
    %0 = vector.load %arg1[%c0, %c0_0] : memref<16x128xf32, #tpu.memory_space<vmem>>, vector<16x128xf32>
    %c0_1 = arith.constant 0 : index
    %c0_2 = arith.constant 0 : index
    %1 = vector.load %arg2[%c0_1, %c0_2] : memref<32x128xf32, #tpu.memory_space<vmem>>, vector<32x128xf32>
    %c0_3 = arith.constant 0 : index
    %c0_4 = arith.constant 0 : index
    %2 = vector.load %arg6[%c0_3, %c0_4] : memref<896x128xbf16, #tpu.memory_space<vmem>>, vector<128x128xbf16>
    %c0_5 = arith.constant 0 : index
    %c0_6 = arith.constant 0 : index
    %3 = vector.load %arg7[%c0_5, %c0_6] : memref<8x128xf32, #tpu.memory_space<vmem>>, vector<1x128xf32>
    %4 = arith.truncf %1 : vector<32x128xf32> to vector<32x128xbf16>
    %cst = arith.constant dense<0.000000e+00> : vector<32x128xf32>
    %5 = tpu.matmul %4, %2, %cst {dimension_numbers = #tpu.dot_dimension_numbers<[1], [0], [0], [1], [0, 0, 1, 1], [], []>} : vector<32x128xbf16>, vector<128x128xbf16>, vector<32x128xf32> -> vector<32x128xf32>
    %6 = vector.broadcast %3 : vector<1x128xf32> to vector<32x128xf32>
    %7 = arith.addf %5, %6 : vector<32x128xf32>
    %c0_7 = arith.constant 0 : index
    %c0_8 = arith.constant 0 : index
    %8 = vector.load %arg3[%c0_7, %c0_8] : memref<32x16xbf16, #tpu.memory_space<vmem>>, vector<32x16xbf16>
    %9 = arith.truncf %0 : vector<16x128xf32> to vector<16x128xbf16>
    %cst_9 = arith.constant dense<0.000000e+00> : vector<32x128xf32>
    %10 = tpu.matmul %8, %9, %cst_9 {dimension_numbers = #tpu.dot_dimension_numbers<[1], [0], [0], [1], [0, 0, 1, 1], [], []>} : vector<32x16xbf16>, vector<16x128xbf16>, vector<32x128xf32> -> vector<32x128xf32>
    %11 = arith.addf %10, %7 : vector<32x128xf32>
    %cst_10 = arith.constant 0.000000e+00 : f32
    %12 = vector.broadcast %cst_10 : f32 to vector<32x128xf32>
    %13 = arith.maximumf %11, %12 : vector<32x128xf32>
    %c0_11 = arith.constant 0 : index
    %c0_12 = arith.constant 0 : index
    %14 = vector.load %arg4[%c0_11, %c0_12] : memref<16x32xbf16, #tpu.memory_space<vmem>>, vector<16x32xbf16>
    %15 = arith.truncf %13 : vector<32x128xf32> to vector<32x128xbf16>
    %cst_13 = arith.constant dense<0.000000e+00> : vector<16x128xf32>
    %16 = tpu.matmul %14, %15, %cst_13 {dimension_numbers = #tpu.dot_dimension_numbers<[1], [0], [0], [1], [0, 0, 1, 1], [], []>} : vector<16x32xbf16>, vector<32x128xbf16>, vector<16x128xf32> -> vector<16x128xf32>
    %17 = arith.addf %0, %16 : vector<16x128xf32>
    %c256 = arith.constant 256 : index
    %c0_14 = arith.constant 0 : index
    %18 = vector.load %arg6[%c256, %c0_14] : memref<896x128xbf16, #tpu.memory_space<vmem>>, vector<128x128xbf16>
    %c2 = arith.constant 2 : index
    %c0_15 = arith.constant 0 : index
    %19 = vector.load %arg7[%c2, %c0_15] : memref<8x128xf32, #tpu.memory_space<vmem>>, vector<1x128xf32>
    %20 = arith.truncf %17 : vector<16x128xf32> to vector<16x128xbf16>
    %cst_16 = arith.constant dense<0.000000e+00> : vector<16x128xf32>
    %21 = tpu.matmul %20, %18, %cst_16 {dimension_numbers = #tpu.dot_dimension_numbers<[1], [0], [0], [1], [0, 0, 1, 1], [], []>} : vector<16x128xbf16>, vector<128x128xbf16>, vector<16x128xf32> -> vector<16x128xf32>
    %22 = vector.broadcast %19 : vector<1x128xf32> to vector<16x128xf32>
    %23 = arith.addf %21, %22 : vector<16x128xf32>
    %cst_17 = arith.constant 0.000000e+00 : f32
    %24 = vector.broadcast %cst_17 : f32 to vector<16x128xf32>
    %25 = arith.maximumf %23, %24 : vector<16x128xf32>
    %c128 = arith.constant 128 : index
    %c0_18 = arith.constant 0 : index
    %26 = vector.load %arg6[%c128, %c0_18] : memref<896x128xbf16, #tpu.memory_space<vmem>>, vector<128x128xbf16>
    %c1 = arith.constant 1 : index
    %c0_19 = arith.constant 0 : index
    %27 = vector.load %arg7[%c1, %c0_19] : memref<8x128xf32, #tpu.memory_space<vmem>>, vector<1x128xf32>
    %28 = arith.truncf %7 : vector<32x128xf32> to vector<32x128xbf16>
    %cst_20 = arith.constant dense<0.000000e+00> : vector<32x128xf32>
    %29 = tpu.matmul %28, %26, %cst_20 {dimension_numbers = #tpu.dot_dimension_numbers<[1], [0], [0], [1], [0, 0, 1, 1], [], []>} : vector<32x128xbf16>, vector<128x128xbf16>, vector<32x128xf32> -> vector<32x128xf32>
    %30 = vector.broadcast %27 : vector<1x128xf32> to vector<32x128xf32>
    %31 = arith.addf %29, %30 : vector<32x128xf32>
    %c0_21 = arith.constant 0 : index
    %c0_22 = arith.constant 0 : index
    %32 = vector.load %arg3[%c0_21, %c0_22] : memref<32x16xbf16, #tpu.memory_space<vmem>>, vector<32x16xbf16>
    %33 = arith.truncf %25 : vector<16x128xf32> to vector<16x128xbf16>
    %cst_23 = arith.constant dense<0.000000e+00> : vector<32x128xf32>
    %34 = tpu.matmul %32, %33, %cst_23 {dimension_numbers = #tpu.dot_dimension_numbers<[1], [0], [0], [1], [0, 0, 1, 1], [], []>} : vector<32x16xbf16>, vector<16x128xbf16>, vector<32x128xf32> -> vector<32x128xf32>
    %35 = arith.addf %34, %31 : vector<32x128xf32>
    %cst_24 = arith.constant 0.000000e+00 : f32
    %36 = vector.broadcast %cst_24 : f32 to vector<32x128xf32>
    %37 = arith.maximumf %35, %36 : vector<32x128xf32>
    %c0_25 = arith.constant 0 : index
    %c0_26 = arith.constant 0 : index
    %38 = vector.load %arg4[%c0_25, %c0_26] : memref<16x32xbf16, #tpu.memory_space<vmem>>, vector<16x32xbf16>
    %39 = arith.truncf %37 : vector<32x128xf32> to vector<32x128xbf16>
    %cst_27 = arith.constant dense<0.000000e+00> : vector<16x128xf32>
    %40 = tpu.matmul %38, %39, %cst_27 {dimension_numbers = #tpu.dot_dimension_numbers<[1], [0], [0], [1], [0, 0, 1, 1], [], []>} : vector<16x32xbf16>, vector<32x128xbf16>, vector<16x128xf32> -> vector<16x128xf32>
    %41 = arith.addf %25, %40 : vector<16x128xf32>
    %c384 = arith.constant 384 : index
    %c0_28 = arith.constant 0 : index
    %42 = vector.load %arg6[%c384, %c0_28] : memref<896x128xbf16, #tpu.memory_space<vmem>>, vector<128x128xbf16>
    %c3 = arith.constant 3 : index
    %c0_29 = arith.constant 0 : index
    %43 = vector.load %arg7[%c3, %c0_29] : memref<8x128xf32, #tpu.memory_space<vmem>>, vector<1x128xf32>
    %44 = arith.truncf %41 : vector<16x128xf32> to vector<16x128xbf16>
    %cst_30 = arith.constant dense<0.000000e+00> : vector<16x128xf32>
    %45 = tpu.matmul %44, %42, %cst_30 {dimension_numbers = #tpu.dot_dimension_numbers<[1], [0], [0], [1], [0, 0, 1, 1], [], []>} : vector<16x128xbf16>, vector<128x128xbf16>, vector<16x128xf32> -> vector<16x128xf32>
    %46 = vector.broadcast %43 : vector<1x128xf32> to vector<16x128xf32>
    %47 = arith.addf %45, %46 : vector<16x128xf32>
    %cst_31 = arith.constant 0.000000e+00 : f32
    %48 = vector.broadcast %cst_31 : f32 to vector<16x128xf32>
    %49 = arith.maximumf %47, %48 : vector<16x128xf32>
    %c0_32 = arith.constant 0 : index
    %c0_33 = arith.constant 0 : index
    %50 = vector.load %arg3[%c0_32, %c0_33] : memref<32x16xbf16, #tpu.memory_space<vmem>>, vector<32x16xbf16>
    %51 = arith.truncf %49 : vector<16x128xf32> to vector<16x128xbf16>
    %cst_34 = arith.constant dense<0.000000e+00> : vector<32x128xf32>
    %52 = tpu.matmul %50, %51, %cst_34 {dimension_numbers = #tpu.dot_dimension_numbers<[1], [0], [0], [1], [0, 0, 1, 1], [], []>} : vector<32x16xbf16>, vector<16x128xbf16>, vector<32x128xf32> -> vector<32x128xf32>
    %53 = arith.addf %52, %31 : vector<32x128xf32>
    %cst_35 = arith.constant 0.000000e+00 : f32
    %54 = vector.broadcast %cst_35 : f32 to vector<32x128xf32>
    %55 = arith.maximumf %53, %54 : vector<32x128xf32>
    %c0_36 = arith.constant 0 : index
    %c0_37 = arith.constant 0 : index
    %56 = vector.load %arg4[%c0_36, %c0_37] : memref<16x32xbf16, #tpu.memory_space<vmem>>, vector<16x32xbf16>
    %57 = arith.truncf %55 : vector<32x128xf32> to vector<32x128xbf16>
    %cst_38 = arith.constant dense<0.000000e+00> : vector<16x128xf32>
    %58 = tpu.matmul %56, %57, %cst_38 {dimension_numbers = #tpu.dot_dimension_numbers<[1], [0], [0], [1], [0, 0, 1, 1], [], []>} : vector<16x32xbf16>, vector<32x128xbf16>, vector<16x128xf32> -> vector<16x128xf32>
    %59 = arith.addf %49, %58 : vector<16x128xf32>
    %c512 = arith.constant 512 : index
    %c0_39 = arith.constant 0 : index
    %60 = vector.load %arg6[%c512, %c0_39] : memref<896x128xbf16, #tpu.memory_space<vmem>>, vector<128x128xbf16>
    %c4 = arith.constant 4 : index
    %c0_40 = arith.constant 0 : index
    %61 = vector.load %arg7[%c4, %c0_40] : memref<8x128xf32, #tpu.memory_space<vmem>>, vector<1x128xf32>
    %62 = arith.truncf %59 : vector<16x128xf32> to vector<16x128xbf16>
    %cst_41 = arith.constant dense<0.000000e+00> : vector<16x128xf32>
    %63 = tpu.matmul %62, %60, %cst_41 {dimension_numbers = #tpu.dot_dimension_numbers<[1], [0], [0], [1], [0, 0, 1, 1], [], []>} : vector<16x128xbf16>, vector<128x128xbf16>, vector<16x128xf32> -> vector<16x128xf32>
    %64 = vector.broadcast %61 : vector<1x128xf32> to vector<16x128xf32>
    %65 = arith.addf %63, %64 : vector<16x128xf32>
    %c0_42 = arith.constant 0 : index
    %c0_43 = arith.constant 0 : index
    %66 = vector.load %arg5[%c0_42, %c0_43] : memref<8x16xf32, #tpu.memory_space<vmem>>, vector<8x16xf32>
    %cst_44 = arith.constant dense<0.000000e+00> : vector<8x128xf32>
    %67 = tpu.matmul %66, %65, %cst_44 {dimension_numbers = #tpu.dot_dimension_numbers<[1], [0], [0], [1], [0, 0, 1, 1], [], []>} : vector<8x16xf32>, vector<16x128xf32>, vector<8x128xf32> -> vector<8x128xf32>
    %c640 = arith.constant 640 : index
    %c0_45 = arith.constant 0 : index
    %68 = vector.load %arg6[%c640, %c0_45] : memref<896x128xbf16, #tpu.memory_space<vmem>>, vector<128x128xbf16>
    %c5 = arith.constant 5 : index
    %c0_46 = arith.constant 0 : index
    %69 = vector.load %arg7[%c5, %c0_46] : memref<8x128xf32, #tpu.memory_space<vmem>>, vector<1x128xf32>
    %70 = arith.truncf %67 : vector<8x128xf32> to vector<8x128xbf16>
    %cst_47 = arith.constant dense<0.000000e+00> : vector<8x128xf32>
    %71 = tpu.matmul %70, %68, %cst_47 {dimension_numbers = #tpu.dot_dimension_numbers<[1], [0], [0], [1], [0, 0, 1, 1], [], []>} : vector<8x128xbf16>, vector<128x128xbf16>, vector<8x128xf32> -> vector<8x128xf32>
    %72 = vector.broadcast %69 : vector<1x128xf32> to vector<8x128xf32>
    %73 = arith.addf %71, %72 : vector<8x128xf32>
    %cst_48 = arith.constant 0.000000e+00 : f32
    %74 = vector.broadcast %cst_48 : f32 to vector<8x128xf32>
    %75 = arith.maximumf %73, %74 : vector<8x128xf32>
    %c768 = arith.constant 768 : index
    %c0_49 = arith.constant 0 : index
    %76 = vector.load %arg6[%c768, %c0_49] : memref<896x128xbf16, #tpu.memory_space<vmem>>, vector<128x128xbf16>
    %c6 = arith.constant 6 : index
    %c0_50 = arith.constant 0 : index
    %77 = vector.load %arg7[%c6, %c0_50] : memref<8x128xf32, #tpu.memory_space<vmem>>, vector<1x128xf32>
    %78 = arith.truncf %75 : vector<8x128xf32> to vector<8x128xbf16>
    %cst_51 = arith.constant dense<0.000000e+00> : vector<8x128xf32>
    %79 = tpu.matmul %78, %76, %cst_51 {dimension_numbers = #tpu.dot_dimension_numbers<[1], [0], [0], [1], [0, 0, 1, 1], [], []>} : vector<8x128xbf16>, vector<128x128xbf16>, vector<8x128xf32> -> vector<8x128xf32>
    %80 = vector.broadcast %77 : vector<1x128xf32> to vector<8x128xf32>
    %81 = arith.addf %79, %80 : vector<8x128xf32>
    %c0_52 = arith.constant 0 : index
    %c0_53 = arith.constant 0 : index
    %82 = vector.load %arg8[%c0_52, %c0_53] : memref<8x128xf32, #tpu.memory_space<vmem>>, vector<8x128xf32>
    tpu.vector_store %arg8[%c0_52, %c0_53], %81 {strides = array<i32>} : memref<8x128xf32, #tpu.memory_space<vmem>>, vector<8x128xf32>,
    return
  }
  func.func @transform_0(%arg0: i32) -> (i32, i32) {
    %c0_i32 = arith.constant 0 : i32
    %c0_i32_0 = arith.constant 0 : i32
    %c0_i32_1 = arith.constant 0 : i32
    return %c0_i32, %c0_i32_0 : i32, i32
  }
  func.func @transform_1(%arg0: i32) -> (i32, i32) {
    %c0_i32 = arith.constant 0 : i32
    %c0_i32_0 = arith.constant 0 : i32
    %c0_i32_1 = arith.constant 0 : i32
    return %c0_i32, %c0_i32_0 : i32, i32
  }
  func.func @transform_2(%arg0: i32) -> (i32, i32) {
    %c0_i32 = arith.constant 0 : i32
    %c0_i32_0 = arith.constant 0 : i32
    %c0_i32_1 = arith.constant 0 : i32
    return %c0_i32, %c0_i32_0 : i32, i32
  }
  func.func @transform_3(%arg0: i32) -> (i32, i32) {
    %c0_i32 = arith.constant 0 : i32
    %c0_i32_0 = arith.constant 0 : i32
    %c0_i32_1 = arith.constant 0 : i32
    return %c0_i32, %c0_i32_0 : i32, i32
  }
  func.func @transform_4(%arg0: i32) -> (i32, i32) {
    %c0_i32 = arith.constant 0 : i32
    %c0_i32_0 = arith.constant 0 : i32
    %c0_i32_1 = arith.constant 0 : i32
    return %c0_i32, %c0_i32_0 : i32, i32
  }
  func.func @transform_5(%arg0: i32) -> (i32, i32) {
    %c0_i32 = arith.constant 0 : i32
    %c0_i32_0 = arith.constant 0 : i32
    %c0_i32_1 = arith.constant 0 : i32
    return %c0_i32, %c0_i32_0 : i32, i32
  }
  func.func @transform_6(%arg0: i32) -> (i32, i32) {
    %c0_i32 = arith.constant 0 : i32
    %c0_i32_0 = arith.constant 0 : i32
    %c0_i32_1 = arith.constant 0 : i32
    return %c0_i32, %c0_i32_0 : i32, i32
  }
  func.func @transform_7(%arg0: i32) -> (i32, i32) {
    %c0_i32 = arith.constant 0 : i32
    %c0_i32_0 = arith.constant 0 : i32
    %c0_i32_1 = arith.constant 0 : i32
    return %c0_i32, %c0_i32_0 : i32, i32
  }
}

</mosaic_0001>

<llo_original>
// kernel: tpu_custom_call.1
$region0: #{tpu_custom_call.1}
  #allocation0 [shape = 'u32[]', space=smem, size = 0x4, offset = 0x4, fixed_abs, tag = 'smem constant byte address 0x4 - core index']
  #allocation1 [shape = 'u32[144,128]{1,0:T(1,128)}', space=vmem, size = 0x12000, scoped, tag = 'internal scratch']
  %s0 = inlined_call_operand.vmem [shape: f32[16,128], index: 0, kind: input, shape index: {}]
  %s1 = inlined_call_operand.hbm [shape: f32[32,128], index: 1, kind: input, shape index: {}]
  %s2 = inlined_call_operand.vmem [shape: bf16[32,16], index: 2, kind: input, shape index: {}]
  %s3 = inlined_call_operand.vmem [shape: bf16[16,32], index: 3, kind: input, shape index: {}]
  %s4 = inlined_call_operand.vmem [shape: f32[8,16], index: 4, kind: input, shape index: {}]
  %s5 = inlined_call_operand.hbm [shape: bf16[896,128], index: 5, kind: input, shape index: {}]
  %s6 = inlined_call_operand.vmem [shape: f32[8,128], index: 6, kind: input, shape index: {}]
  %s7 = inlined_call_operand.hbm [shape: f32[8,128], index: 7, kind: output, shape index: {}]
  %s8 = sld [smem:[#allocation0]]
  $region46: #{tpu_custom_call.1} parent=0
    _
  %s10 = ssub.s32 1, %s8
  %s11 = scalar_select 0, %s10, %s8
  $region1: #{tpu_custom_call.1} parent=0
    #allocation2 [shape = 'u8[16384]{0}', space=vmem, size = 0x4000, scoped, tag = 'input window, operand 1, single buffered']
    #allocation3 [shape = 's32[1]{0}', space=sflag, size = 0x4, scoped, tag = 'scoped memory for tpu_custom_call.1']
    #allocation4 [shape = 's32[1]{0}', space=sflag, size = 0x4, scoped, tag = 'scoped memory for tpu_custom_call.1']
    #allocation5 [shape = 'u8[229376]{0}', space=vmem, size = 0x38000, scoped, tag = 'input window, operand 5, single buffered']
    #allocation6 [shape = 's32[1]{0}', space=sflag, size = 0x4, scoped, tag = 'scoped memory for tpu_custom_call.1']
    #allocation7 [shape = 'u8[4096]{0}', space=vmem, size = 0x1000, scoped, tag = 'output window, operand 0, single buffered']
    %12 = vsyncpa [#allocation3], 0
    %13 = vsyncpa [#allocation6], 0
    %14 = vsyncpa [#allocation4], 0
    // Predicated region
    $region2: #{tpu_custom_call.1} parent=1 // pred_check
      _
    $region3: #{tpu_custom_call.1} parent=1 // pred_check_branch
      %16 = sbr.rel (0) target = $region5
    $region4: #{tpu_custom_call.1} parent=1 // pred_region
      _
    $region5: #{tpu_custom_call.1} parent=1 // pred_fallthru
      _
    // Predicated region
    $region6: #{tpu_custom_call.1} parent=1 // pred_check
      _
    $region7: #{tpu_custom_call.1} parent=1 // pred_check_branch
      %18 = sbr.rel (0) target = $region9
    $region8: #{tpu_custom_call.1} parent=1 // pred_region
      %s20 = ssub.s32 512, 512
      %21 = vsyncadd [#allocation3], %s20
      %s22 = sshll.u32 [#allocation2], 4
      %s23 = int_to_ptr.vmem [resolvable:$true] %s22
      %28 = dma.hbm_to_vmem [thread:$0]  %s1, 512, %s23, [#allocation3], 128, 128, 8
    $region9: #{tpu_custom_call.1} parent=1 // pred_fallthru
      _
    // Predicated region
    $region10: #{tpu_custom_call.1} parent=1 // pred_check
      _
    $region11: #{tpu_custom_call.1} parent=1 // pred_check_branch
      %30 = sbr.rel (0) target = $region13
    $region12: #{tpu_custom_call.1} parent=1 // pred_region
      _
    $region13: #{tpu_custom_call.1} parent=1 // pred_fallthru
      _
    // Predicated region
    $region14: #{tpu_custom_call.1} parent=1 // pred_check
      _
    $region15: #{tpu_custom_call.1} parent=1 // pred_check_branch
      %32 = sbr.rel (0) target = $region17
    $region16: #{tpu_custom_call.1} parent=1 // pred_region
      _
    $region17: #{tpu_custom_call.1} parent=1 // pred_fallthru
      _
    // Predicated region
    $region18: #{tpu_custom_call.1} parent=1 // pred_check
      _
    $region19: #{tpu_custom_call.1} parent=1 // pred_check_branch
      %34 = sbr.rel (0) target = $region21
    $region20: #{tpu_custom_call.1} parent=1 // pred_region
      _
    $region21: #{tpu_custom_call.1} parent=1 // pred_fallthru
      _
    // Predicated region
    $region22: #{tpu_custom_call.1} parent=1 // pred_check
      _
    $region23: #{tpu_custom_call.1} parent=1 // pred_check_branch
      %36 = sbr.rel (0) target = $region25
    $region24: #{tpu_custom_call.1} parent=1 // pred_region
      %s38 = ssub.s32 7168, 7168
      %39 = vsyncadd [#allocation6], %s38
      %s40 = sshll.u32 [#allocation5], 4
      %s41 = int_to_ptr.vmem [resolvable:$true] %s40
      %46 = dma.hbm_to_vmem [thread:$0]  %s5, 7168, %s41, [#allocation6], 64, 64, 4
    $region25: #{tpu_custom_call.1} parent=1 // pred_fallthru
      _
    // Predicated region
    $region26: #{tpu_custom_call.1} parent=1 // pred_check
      _
    $region27: #{tpu_custom_call.1} parent=1 // pred_check_branch
      %48 = sbr.rel (0) target = $region29
    $region28: #{tpu_custom_call.1} parent=1 // pred_region
      _
    $region29: #{tpu_custom_call.1} parent=1 // pred_fallthru
      _
    // Predicated region
    $region30: #{tpu_custom_call.1} parent=1 // pred_check
      _
    $region31: #{tpu_custom_call.1} parent=1 // pred_check_branch
      %50 = sbr.rel (0) target = $region33
    $region32: #{tpu_custom_call.1} parent=1 // pred_region
      %51 = dma.done [#allocation3], 512
    $region33: #{tpu_custom_call.1} parent=1 // pred_fallthru
      _
    // Predicated region
    $region34: #{tpu_custom_call.1} parent=1 // pred_check
      _
    $region35: #{tpu_custom_call.1} parent=1 // pred_check_branch
      %53 = sbr.rel (0) target = $region37
    $region36: #{tpu_custom_call.1} parent=1 // pred_region
      %54 = dma.done [#allocation6], 7168
    $region37: #{tpu_custom_call.1} parent=1 // pred_fallthru
      _
    %v56 = vld [vmem:[%s0] sm:$0xff]
    %v57 = vld [vmem:[%s0 + $0x8] sm:$0xff]
    %v58 = vld [vmem:[#allocation2] sm:$0xff]
    %v59 = vld [vmem:[#allocation2 + $0x8] sm:$0xff]
    %v60 = vld [vmem:[#allocation2 + $0x10] sm:$0xff]
    %v61 = vld [vmem:[#allocation2 + $0x18] sm:$0xff]
    %v62 = vld [vmem:[#allocation5] sm:$0xf]
    %v63 = vld [vmem:[#allocation5 + $0x4] sm:$0xf]
    %v64 = vld [vmem:[#allocation5 + $0x8] sm:$0xf]
    %v65 = vld [vmem:[#allocation5 + $0xc] sm:$0xf]
    %v66 = vld [vmem:[#allocation5 + $0x10] sm:$0xf]
    %v67 = vld [vmem:[#allocation5 + $0x14] sm:$0xf]
    %v68 = vld [vmem:[#allocation5 + $0x18] sm:$0xf]
    %v69 = vld [vmem:[#allocation5 + $0x1c] sm:$0xf]
    %v70 = vld [vmem:[#allocation5 + $0x20] sm:$0xf]
    %v71 = vld [vmem:[#allocation5 + $0x24] sm:$0xf]
    %v72 = vld [vmem:[#allocation5 + $0x28] sm:$0xf]
    %v73 = vld [vmem:[#allocation5 + $0x2c] sm:$0xf]
    %v74 = vld [vmem:[#allocation5 + $0x30] sm:$0xf]
    %v75 = vld [vmem:[#allocation5 + $0x34] sm:$0xf]
    %v76 = vld [vmem:[#allocation5 + $0x38] sm:$0xf]
    %v77 = vld [vmem:[#allocation5 + $0x3c] sm:$0xf]
    %v78 = vld [vmem:[%s6] sm:$0x1]
    %v79 = vpack.c.bf16 %v59, %v58
    %v80 = vpack.c.bf16 %v61, %v60
    %v81 = vlaneseq
    %v82 = vshrl.u32 %v81, 7
    %v83 = vsub.s32 0, %v82
    %v84 = vrot.slane %v78, %v83
    %v101 = vunpack.c.l.b16 %v62
    %v102 = vunpack.c.l.b16 %v63
    %v103 = vunpack.c.l.b16 %v64
    %v104 = vunpack.c.l.b16 %v65
    %v105 = vunpack.c.l.b16 %v66
    %v106 = vunpack.c.l.b16 %v67
    %v107 = vunpack.c.l.b16 %v68
    %v108 = vunpack.c.l.b16 %v69
    %v109 = vunpack.c.l.b16 %v70
    %v110 = vunpack.c.l.b16 %v71
    %v111 = vunpack.c.l.b16 %v72
    %v112 = vunpack.c.l.b16 %v73
    %v113 = vunpack.c.l.b16 %v74
    %v114 = vunpack.c.l.b16 %v75
    %v115 = vunpack.c.l.b16 %v76
    %v116 = vunpack.c.l.b16 %v77
    %v117 = vpack.c.b16 %v102, %v101
    %v118 = vpack.c.b16 %v104, %v103
    %v119 = vpack.c.b16 %v106, %v105
    %v120 = vpack.c.b16 %v108, %v107
    %v121 = vpack.c.b16 %v110, %v109
    %v122 = vpack.c.b16 %v112, %v111
    %v123 = vpack.c.b16 %v114, %v113
    %v124 = vpack.c.b16 %v116, %v115
    %133 = vmatprep.subr.bf16.mxu0 0
    %134 = vmatpush1.bf16.msra.mxu0 %v117
    %135 = vmatprep.subr.bf16.mxu0 0
    %136 = vmatpush1.bf16.msra.mxu0 %v118
    %137 = vmatprep.subr.bf16.mxu0 0
    %138 = vmatpush1.bf16.msra.mxu0 %v119
    %139 = vmatprep.subr.bf16.mxu0 0
    %140 = vmatpush1.bf16.msra.mxu0 %v120
    %141 = vmatprep.subr.bf16.mxu0 0
    %142 = vmatpush1.bf16.msra.mxu0 %v121
    %143 = vmatprep.subr.bf16.mxu0 0
    %144 = vmatpush1.bf16.msra.mxu0 %v122
    %145 = vmatprep.subr.bf16.mxu0 0
    %146 = vmatpush1.bf16.msra.mxu0 %v123
    %147 = vmatprep.subr.bf16.mxu0 0
    %148 = vmatpush1.bf16.msra.mxu0 %v124
    %149 = vmatprep.subr.bf16.mxu0 0
    %150 = vmatpush1.bf16.msra.mxu0 0
    %151 = vmatprep.subr.bf16.mxu0 0
    %152 = vmatpush1.bf16.msra.mxu0 0
    %153 = vmatprep.subr.bf16.mxu0 0
    %154 = vmatpush1.bf16.msra.mxu0 0
    %155 = vmatprep.subr.bf16.mxu0 0
    %156 = vmatpush1.bf16.msra.mxu0 0
    %157 = vmatprep.subr.bf16.mxu0 0
    %158 = vmatpush1.bf16.msra.mxu0 0
    %159 = vmatprep.subr.bf16.mxu0 0
    %160 = vmatpush1.bf16.msra.mxu0 0
    %161 = vmatprep.subr.bf16.mxu0 0
    %162 = vmatpush1.bf16.msra.mxu0 0
    %163 = vmatprep.subr.bf16.mxu0 0
    %164 = vmatpush1.bf16.msra.mxu0 0
    %165 = vmatprep.mubr.bf16.mxu0 0
    %166 = vmatmul.mubr.bf16.gmra.mrb[0].mxu0 %v79
    %v167 = vpop.f32.mrb[0].mxu0
    %v168 = vadd.f32 %v84, %v167
    %v169 = vpop.f32.mrb[0].mxu0
    %v170 = vpop.f32.mrb[0].mxu0
    %v171 = vadd.f32 %v84, %v170
    %v172 = vpop.f32.mrb[0].mxu0
    %173 = vmatprep.mubr.bf16.mxu0 0
    %174 = vmatmul.mubr.bf16.gmra.mrb[0].mxu0 %v80
    %v175 = vpop.f32.mrb[0].mxu0
    %v176 = vadd.f32 %v84, %v175
    %v177 = vpop.f32.mrb[0].mxu0
    %v178 = vpop.f32.mrb[0].mxu0
    %v179 = vadd.f32 %v84, %v178
    %v180 = vpop.f32.mrb[0].mxu0
    %181 = vdwg.mxu0
    %v182 = vld [vmem:[%s2] sm:$0xf]
    %v183 = vld [vmem:[%s2 + $0x4] sm:$0xf]
    %v184 = vld [vmem:[%s2 + $0x8] sm:$0xf]
    %v185 = vld [vmem:[%s2 + $0xc] sm:$0xf]
    %v186 = vpack.c.bf16 %v57, %v56
    %v191 = vunpack.c.l.b16 %v182
    %v192 = vunpack.c.l.b16 %v183
    %v193 = vunpack.c.l.b16 %v184
    %v194 = vunpack.c.l.b16 %v185
    %v195 = vpack.c.b16 %v192, %v191
    %v196 = vpack.c.b16 %v194, %v193
    %vm197 = vcmask 130048
    %v199 = vsel %vm197, %v195, 0
    %v202 = vsel %vm197, %v196, 0
    %204 = vmatprep.subr.bf16.mxu0 0
    %205 = vmatpush1.bf16.msra.mxu0 %v186
    %206 = vmatprep.subr.bf16.mxu0 0
    %207 = vmatpush1.bf16.msra.mxu0 0
    %208 = vmatprep.subr.bf16.mxu0 0
    %209 = vmatpush1.bf16.msra.mxu0 0
    %210 = vmatprep.subr.bf16.mxu0 0
    %211 = vmatpush1.bf16.msra.mxu0 0
    %212 = vmatprep.subr.bf16.mxu0 0
    %213 = vmatpush1.bf16.msra.mxu0 0
    %214 = vmatprep.subr.bf16.mxu0 0
    %215 = vmatpush1.bf16.msra.mxu0 0
    %216 = vmatprep.subr.bf16.mxu0 0
    %217 = vmatpush1.bf16.msra.mxu0 0
    %218 = vmatprep.subr.bf16.mxu0 0
    %219 = vmatpush1.bf16.msra.mxu0 0
    %220 = vmatprep.subr.bf16.mxu0 0
    %221 = vmatpush1.bf16.msra.mxu0 0
    %222 = vmatprep.subr.bf16.mxu0 0
    %223 = vmatpush1.bf16.msra.mxu0 0
    %224 = vmatprep.subr.bf16.mxu0 0
    %225 = vmatpush1.bf16.msra.mxu0 0
    %226 = vmatprep.subr.bf16.mxu0 0
    %227 = vmatpush1.bf16.msra.mxu0 0
    %228 = vmatprep.subr.bf16.mxu0 0
    %229 = vmatpush1.bf16.msra.mxu0 0
    %230 = vmatprep.subr.bf16.mxu0 0
    %231 = vmatpush1.bf16.msra.mxu0 0
    %232 = vmatprep.subr.bf16.mxu0 0
    %233 = vmatpush1.bf16.msra.mxu0 0
    %234 = vmatprep.subr.bf16.mxu0 0
    %235 = vmatpush1.bf16.msra.mxu0 0
    %236 = vmatprep.mubr.bf16.mxu0 0
    %237 = vmatmul.mubr.bf16.gmra.mrb[0].mxu0 %v199
    %v238 = vpop.f32.mrb[0].mxu0
    %v239 = vadd.f32 %v168, %v238
    %v240 = vpop.f32.mrb[0].mxu0
    %v241 = vpop.f32.mrb[0].mxu0
    %v242 = vadd.f32 %v171, %v241
    %v243 = vpop.f32.mrb[0].mxu0
    %244 = vmatprep.mubr.bf16.mxu0 0
    %245 = vmatmul.mubr.bf16.gmra.mrb[0].mxu0 %v202
    %v246 = vpop.f32.mrb[0].mxu0
    %v247 = vadd.f32 %v176, %v246
    %v248 = vpop.f32.mrb[0].mxu0
    %v249 = vpop.f32.mrb[0].mxu0
    %v250 = vadd.f32 %v179, %v249
    %v251 = vpop.f32.mrb[0].mxu0
    %252 = vdwg.mxu0
    %v253 = vmax.f32 %v239, 0.0
    %v254 = vmax.f32 %v242, 0.0
    %v255 = vmax.f32 %v247, 0.0
    %v256 = vmax.f32 %v250, 0.0
    %v257 = vld [vmem:[%s3] sm:$0xf]
    %v258 = vld [vmem:[%s3 + $0x4] sm:$0xf]
    %v259 = vpack.c.bf16 %v254, %v253
    %v260 = vpack.c.bf16 %v256, %v255
    %v263 = vunpack.c.l.b16 %v257
    %v264 = vunpack.c.l.b16 %v258
    %v265 = vpack.c.b16 %v264, %v263
    %vm266 = vcmask 261120
    %v268 = vsel %vm266, %v265, 0
    %270 = vmatprep.subr.bf16.mxu0 0
    %271 = vmatpush1.bf16.msra.mxu0 %v259
    %272 = vmatprep.subr.bf16.mxu0 0
    %273 = vmatpush1.bf16.msra.mxu0 %v260
    %274 = vmatprep.subr.bf16.mxu0 0
    %275 = vmatpush1.bf16.msra.mxu0 0
    %276 = vmatprep.subr.bf16.mxu0 0
    %277 = vmatpush1.bf16.msra.mxu0 0
    %278 = vmatprep.subr.bf16.mxu0 0
    %279 = vmatpush1.bf16.msra.mxu0 0
    %280 = vmatprep.subr.bf16.mxu0 0
    %281 = vmatpush1.bf16.msra.mxu0 0
    %282 = vmatprep.subr.bf16.mxu0 0
    %283 = vmatpush1.bf16.msra.mxu0 0
    %284 = vmatprep.subr.bf16.mxu0 0
    %285 = vmatpush1.bf16.msra.mxu0 0
    %286 = vmatprep.subr.bf16.mxu0 0
    %287 = vmatpush1.bf16.msra.mxu0 0
    %288 = vmatprep.subr.bf16.mxu0 0
    %289 = vmatpush1.bf16.msra.mxu0 0
    %290 = vmatprep.subr.bf16.mxu0 0
    %291 = vmatpush1.bf16.msra.mxu0 0
    %292 = vmatprep.subr.bf16.mxu0 0
    %293 = vmatpush1.bf16.msra.mxu0 0
    %294 = vmatprep.subr.bf16.mxu0 0
    %295 = vmatpush1.bf16.msra.mxu0 0
    %296 = vmatprep.subr.bf16.mxu0 0
    %297 = vmatpush1.bf16.msra.mxu0 0
    %298 = vmatprep.subr.bf16.mxu0 0
    %299 = vmatpush1.bf16.msra.mxu0 0
    %300 = vmatprep.subr.bf16.mxu0 0
    %301 = vmatpush1.bf16.msra.mxu0 0
    %302 = vmatprep.mubr.bf16.mxu0 0
    %303 = vmatmul.mubr.bf16.gmra.mrb[0].mxu0 %v268
    %v304 = vpop.f32.mrb[0].mxu0
    %v305 = vadd.f32 0.0, %v304
    %v306 = vpop.f32.mrb[0].mxu0
    %v307 = vpop.f32.mrb[0].mxu0
    %v308 = vadd.f32 0.0, %v307
    %v309 = vpop.f32.mrb[0].mxu0
    %310 = vdwg.mxu0
    %v311 = vadd.f32 %v56, %v305
    %v312 = vadd.f32 %v57, %v308
    %v313 = vld [vmem:[#allocation5 + $0x80] sm:$0xf]
    %v314 = vld [vmem:[#allocation5 + $0x84] sm:$0xf]
    %v315 = vld [vmem:[#allocation5 + $0x88] sm:$0xf]
    %v316 = vld [vmem:[#allocation5 + $0x8c] sm:$0xf]
    %v317 = vld [vmem:[#allocation5 + $0x90] sm:$0xf]
    %v318 = vld [vmem:[#allocation5 + $0x94] sm:$0xf]
    %v319 = vld [vmem:[#allocation5 + $0x98] sm:$0xf]
    %v320 = vld [vmem:[#allocation5 + $0x9c] sm:$0xf]
    %v321 = vld [vmem:[#allocation5 + $0xa0] sm:$0xf]
    %v322 = vld [vmem:[#allocation5 + $0xa4] sm:$0xf]
    %v323 = vld [vmem:[#allocation5 + $0xa8] sm:$0xf]
    %v324 = vld [vmem:[#allocation5 + $0xac] sm:$0xf]
    %v325 = vld [vmem:[#allocation5 + $0xb0] sm:$0xf]
    %v326 = vld [vmem:[#allocation5 + $0xb4] sm:$0xf]
    %v327 = vld [vmem:[#allocation5 + $0xb8] sm:$0xf]
    %v328 = vld [vmem:[#allocation5 + $0xbc] sm:$0xf]
    %v329 = vld [vmem:[%s6 + $0x2] sm:$0x1]
    %v330 = vpack.c.bf16 %v312, %v311
    %v331 = vlaneseq
    %v332 = vshrl.u32 %v331, 7
    %v333 = vsub.s32 0, %v332
    %v334 = vrot.slane %v329, %v333
    %v351 = vunpack.c.l.b16 %v313
    %v352 = vunpack.c.l.b16 %v314
    %v353 = vunpack.c.l.b16 %v315
    %v354 = vunpack.c.l.b16 %v316
    %v355 = vunpack.c.l.b16 %v317
    %v356 = vunpack.c.l.b16 %v318
    %v357 = vunpack.c.l.b16 %v319
    %v358 = vunpack.c.l.b16 %v320
    %v359 = vunpack.c.l.b16 %v321
    %v360 = vunpack.c.l.b16 %v322
    %v361 = vunpack.c.l.b16 %v323
    %v362 = vunpack.c.l.b16 %v324
    %v363 = vunpack.c.l.b16 %v325
    %v364 = vunpack.c.l.b16 %v326
    %v365 = vunpack.c.l.b16 %v327
    %v366 = vunpack.c.l.b16 %v328
    %v367 = vpack.c.b16 %v352, %v351
    %v368 = vpack.c.b16 %v354, %v353
    %v369 = vpack.c.b16 %v356, %v355
    %v370 = vpack.c.b16 %v358, %v357
    %v371 = vpack.c.b16 %v360, %v359
    %v372 = vpack.c.b16 %v362, %v361
    %v373 = vpack.c.b16 %v364, %v363
    %v374 = vpack.c.b16 %v366, %v365
    %383 = vmatprep.subr.bf16.mxu0 0
    %384 = vmatpush1.bf16.msra.mxu0 %v367
    %385 = vmatprep.subr.bf16.mxu0 0
    %386 = vmatpush1.bf16.msra.mxu0 %v368
    %387 = vmatprep.subr.bf16.mxu0 0
    %388 = vmatpush1.bf16.msra.mxu0 %v369
    %389 = vmatprep.subr.bf16.mxu0 0
    %390 = vmatpush1.bf16.msra.mxu0 %v370
    %391 = vmatprep.subr.bf16.mxu0 0
    %392 = vmatpush1.bf16.msra.mxu0 %v371
    %393 = vmatprep.subr.bf16.mxu0 0
    %394 = vmatpush1.bf16.msra.mxu0 %v372
    %395 = vmatprep.subr.bf16.mxu0 0
    %396 = vmatpush1.bf16.msra.mxu0 %v373
    %397 = vmatprep.subr.bf16.mxu0 0
    %398 = vmatpush1.bf16.msra.mxu0 %v374
    %399 = vmatprep.subr.bf16.mxu0 0
    %400 = vmatpush1.bf16.msra.mxu0 0
    %401 = vmatprep.subr.bf16.mxu0 0
    %402 = vmatpush1.bf16.msra.mxu0 0
    %403 = vmatprep.subr.bf16.mxu0 0
    %404 = vmatpush1.bf16.msra.mxu0 0
    %405 = vmatprep.subr.bf16.mxu0 0
    %406 = vmatpush1.bf16.msra.mxu0 0
    %407 = vmatprep.subr.bf16.mxu0 0
    %408 = vmatpush1.bf16.msra.mxu0 0
    %409 = vmatprep.subr.bf16.mxu0 0
    %410 = vmatpush1.bf16.msra.mxu0 0
    %411 = vmatprep.subr.bf16.mxu0 0
    %412 = vmatpush1.bf16.msra.mxu0 0
    %413 = vmatprep.subr.bf16.mxu0 0
    %414 = vmatpush1.bf16.msra.mxu0 0
    %415 = vmatprep.mubr.bf16.mxu0 0
    %416 = vmatmul.mubr.bf16.gmra.mrb[0].mxu0 %v330
    %v417 = vpop.f32.mrb[0].mxu0
    %v418 = vadd.f32 %v334, %v417
    %v419 = vpop.f32.mrb[0].mxu0
    %v420 = vpop.f32.mrb[0].mxu0
    %v421 = vadd.f32 %v334, %v420
    %v422 = vpop.f32.mrb[0].mxu0
    %423 = vdwg.mxu0
    %v424 = vmax.f32 %v418, 0.0
    %v425 = vmax.f32 %v421, 0.0
    %v426 = vld [vmem:[#allocation5 + $0x40] sm:$0xf]
    %v427 = vld [vmem:[#allocation5 + $0x44] sm:$0xf]
    %v428 = vld [vmem:[#allocation5 + $0x48] sm:$0xf]
    %v429 = vld [vmem:[#allocation5 + $0x4c] sm:$0xf]
    %v430 = vld [vmem:[#allocation5 + $0x50] sm:$0xf]
    %v431 = vld [vmem:[#allocation5 + $0x54] sm:$0xf]
    %v432 = vld [vmem:[#allocation5 + $0x58] sm:$0xf]
    %v433 = vld [vmem:[#allocation5 + $0x5c] sm:$0xf]
    %v434 = vld [vmem:[#allocation5 + $0x60] sm:$0xf]
    %v435 = vld [vmem:[#allocation5 + $0x64] sm:$0xf]
    %v436 = vld [vmem:[#allocation5 + $0x68] sm:$0xf]
    %v437 = vld [vmem:[#allocation5 + $0x6c] sm:$0xf]
    %v438 = vld [vmem:[#allocation5 + $0x70] sm:$0xf]
    %v439 = vld [vmem:[#allocation5 + $0x74] sm:$0xf]
    %v440 = vld [vmem:[#allocation5 + $0x78] sm:$0xf]
    %v441 = vld [vmem:[#allocation5 + $0x7c] sm:$0xf]
    %v442 = vld [vmem:[%s6 + $0x1] sm:$0x1]
    %v443 = vpack.c.bf16 %v171, %v168
    %v444 = vpack.c.bf16 %v179, %v176
    %v445 = vlaneseq
    %v446 = vshrl.u32 %v445, 7
    %v447 = vsub.s32 0, %v446
    %v448 = vrot.slane %v442, %v447
    %v465 = vunpack.c.l.b16 %v426
    %v466 = vunpack.c.l.b16 %v427
    %v467 = vunpack.c.l.b16 %v428
    %v468 = vunpack.c.l.b16 %v429
    %v469 = vunpack.c.l.b16 %v430
    %v470 = vunpack.c.l.b16 %v431
    %v471 = vunpack.c.l.b16 %v432
    %v472 = vunpack.c.l.b16 %v433
    %v473 = vunpack.c.l.b16 %v434
    %v474 = vunpack.c.l.b16 %v435
    %v475 = vunpack.c.l.b16 %v436
    %v476 = vunpack.c.l.b16 %v437
    %v477 = vunpack.c.l.b16 %v438
    %v478 = vunpack.c.l.b16 %v439
    %v479 = vunpack.c.l.b16 %v440
    %v480 = vunpack.c.l.b16 %v441
    %v481 = vpack.c.b16 %v466, %v465
    %v482 = vpack.c.b16 %v468, %v467
    %v483 = vpack.c.b16 %v470, %v469
    %v484 = vpack.c.b16 %v472, %v471
    %v485 = vpack.c.b16 %v474, %v473
    %v486 = vpack.c.b16 %v476, %v475
    %v487 = vpack.c.b16 %v478, %v477
    %v488 = vpack.c.b16 %v480, %v479
    %497 = vmatprep.subr.bf16.mxu0 0
    %498 = vmatpush1.bf16.msra.mxu0 %v481
    %499 = vmatprep.subr.bf16.mxu0 0
    %500 = vmatpush1.bf16.msra.mxu0 %v482
    %501 = vmatprep.subr.bf16.mxu0 0
    %502 = vmatpush1.bf16.msra.mxu0 %v483
    %503 = vmatprep.subr.bf16.mxu0 0
    %504 = vmatpush1.bf16.msra.mxu0 %v484
    %505 = vmatprep.subr.bf16.mxu0 0
    %506 = vmatpush1.bf16.msra.mxu0 %v485
    %507 = vmatprep.subr.bf16.mxu0 0
    %508 = vmatpush1.bf16.msra.mxu0 %v486
    %509 = vmatprep.subr.bf16.mxu0 0
    %510 = vmatpush1.bf16.msra.mxu0 %v487
    %511 = vmatprep.subr.bf16.mxu0 0
    %512 = vmatpush1.bf16.msra.mxu0 %v488
    %513 = vmatprep.subr.bf16.mxu0 0
    %514 = vmatpush1.bf16.msra.mxu0 0
    %515 = vmatprep.subr.bf16.mxu0 0
    %516 = vmatpush1.bf16.msra.mxu0 0
    %517 = vmatprep.subr.bf16.mxu0 0
    %518 = vmatpush1.bf16.msra.mxu0 0
    %519 = vmatprep.subr.bf16.mxu0 0
    %520 = vmatpush1.bf16.msra.mxu0 0
    %521 = vmatprep.subr.bf16.mxu0 0
    %522 = vmatpush1.bf16.msra.mxu0 0
    %523 = vmatprep.subr.bf16.mxu0 0
    %524 = vmatpush1.bf16.msra.mxu0 0
    %525 = vmatprep.subr.bf16.mxu0 0
    %526 = vmatpush1.bf16.msra.mxu0 0
    %527 = vmatprep.subr.bf16.mxu0 0
    %528 = vmatpush1.bf16.msra.mxu0 0
    %529 = vmatprep.mubr.bf16.mxu0 0
    %530 = vmatmul.mubr.bf16.gmra.mrb[0].mxu0 %v443
    %v531 = vpop.f32.mrb[0].mxu0
    %v532 = vadd.f32 %v448, %v531
    %v533 = vpop.f32.mrb[0].mxu0
    %v534 = vpop.f32.mrb[0].mxu0
    %v535 = vadd.f32 %v448, %v534
    %v536 = vpop.f32.mrb[0].mxu0
    %537 = vmatprep.mubr.bf16.mxu0 0
    %538 = vmatmul.mubr.bf16.gmra.mrb[0].mxu0 %v444
    %v539 = vpop.f32.mrb[0].mxu0
    %v540 = vadd.f32 %v448, %v539
    %v541 = vpop.f32.mrb[0].mxu0
    %v542 = vpop.f32.mrb[0].mxu0
    %v543 = vadd.f32 %v448, %v542
    %v544 = vpop.f32.mrb[0].mxu0
    %545 = vdwg.mxu0
    %v546 = vpack.c.bf16 %v425, %v424
    %547 = vmatprep.subr.bf16.mxu0 0
    %548 = vmatpush1.bf16.msra.mxu0 %v546
    %549 = vmatprep.subr.bf16.mxu0 0
    %550 = vmatpush1.bf16.msra.mxu0 0
    %551 = vmatprep.subr.bf16.mxu0 0
    %552 = vmatpush1.bf16.msra.mxu0 0
    %553 = vmatprep.subr.bf16.mxu0 0
    %554 = vmatpush1.bf16.msra.mxu0 0
    %555 = vmatprep.subr.bf16.mxu0 0
    %556 = vmatpush1.bf16.msra.mxu0 0
    %557 = vmatprep.subr.bf16.mxu0 0
    %558 = vmatpush1.bf16.msra.mxu0 0
    %559 = vmatprep.subr.bf16.mxu0 0
    %560 = vmatpush1.bf16.msra.mxu0 0
    %561 = vmatprep.subr.bf16.mxu0 0
    %562 = vmatpush1.bf16.msra.mxu0 0
    %563 = vmatprep.subr.bf16.mxu0 0
    %564 = vmatpush1.bf16.msra.mxu0 0
    %565 = vmatprep.subr.bf16.mxu0 0
    %566 = vmatpush1.bf16.msra.mxu0 0
    %567 = vmatprep.subr.bf16.mxu0 0
    %568 = vmatpush1.bf16.msra.mxu0 0
    %569 = vmatprep.subr.bf16.mxu0 0
    %570 = vmatpush1.bf16.msra.mxu0 0
    %571 = vmatprep.subr.bf16.mxu0 0
    %572 = vmatpush1.bf16.msra.mxu0 0
    %573 = vmatprep.subr.bf16.mxu0 0
    %574 = vmatpush1.bf16.msra.mxu0 0
    %575 = vmatprep.subr.bf16.mxu0 0
    %576 = vmatpush1.bf16.msra.mxu0 0
    %577 = vmatprep.subr.bf16.mxu0 0
    %578 = vmatpush1.bf16.msra.mxu0 0
    %579 = vmatprep.mubr.bf16.mxu0 0
    %580 = vmatmul.mubr.bf16.gmra.mrb[0].mxu0 %v199
    %v581 = vpop.f32.mrb[0].mxu0
    %v582 = vadd.f32 %v532, %v581
    %v583 = vpop.f32.mrb[0].mxu0
    %v584 = vpop.f32.mrb[0].mxu0
    %v585 = vadd.f32 %v535, %v584
    %v586 = vpop.f32.mrb[0].mxu0
    %587 = vmatprep.mubr.bf16.mxu0 0
    %588 = vmatmul.mubr.bf16.gmra.mrb[0].mxu0 %v202
    %v589 = vpop.f32.mrb[0].mxu0
    %v590 = vadd.f32 %v540, %v589
    %v591 = vpop.f32.mrb[0].mxu0
    %v592 = vpop.f32.mrb[0].mxu0
    %v593 = vadd.f32 %v543, %v592
    %v594 = vpop.f32.mrb[0].mxu0
    %595 = vdwg.mxu0
    %v596 = vmax.f32 %v582, 0.0
    %v597 = vmax.f32 %v585, 0.0
    %v598 = vmax.f32 %v590, 0.0
    %v599 = vmax.f32 %v593, 0.0
    %v600 = vpack.c.bf16 %v597, %v596
    %v601 = vpack.c.bf16 %v599, %v598
    %602 = vmatprep.subr.bf16.mxu0 0
    %603 = vmatpush1.bf16.msra.mxu0 %v600
    %604 = vmatprep.subr.bf16.mxu0 0
    %605 = vmatpush1.bf16.msra.mxu0 %v601
    %606 = vmatprep.subr.bf16.mxu0 0
    %607 = vmatpush1.bf16.msra.mxu0 0
    %608 = vmatprep.subr.bf16.mxu0 0
    %609 = vmatpush1.bf16.msra.mxu0 0
    %610 = vmatprep.subr.bf16.mxu0 0
    %611 = vmatpush1.bf16.msra.mxu0 0
    %612 = vmatprep.subr.bf16.mxu0 0
    %613 = vmatpush1.bf16.msra.mxu0 0
    %614 = vmatprep.subr.bf16.mxu0 0
    %615 = vmatpush1.bf16.msra.mxu0 0
    %616 = vmatprep.subr.bf16.mxu0 0
    %617 = vmatpush1.bf16.msra.mxu0 0
    %618 = vmatprep.subr.bf16.mxu0 0
    %619 = vmatpush1.bf16.msra.mxu0 0
    %620 = vmatprep.subr.bf16.mxu0 0
    %621 = vmatpush1.bf16.msra.mxu0 0
    %622 = vmatprep.subr.bf16.mxu0 0
    %623 = vmatpush1.bf16.msra.mxu0 0
    %624 = vmatprep.subr.bf16.mxu0 0
    %625 = vmatpush1.bf16.msra.mxu0 0
    %626 = vmatprep.subr.bf16.mxu0 0
    %627 = vmatpush1.bf16.msra.mxu0 0
    %628 = vmatprep.subr.bf16.mxu0 0
    %629 = vmatpush1.bf16.msra.mxu0 0
    %630 = vmatprep.subr.bf16.mxu0 0
    %631 = vmatpush1.bf16.msra.mxu0 0
    %632 = vmatprep.subr.bf16.mxu0 0
    %633 = vmatpush1.bf16.msra.mxu0 0
    %634 = vmatprep.mubr.bf16.mxu0 0
    %635 = vmatmul.mubr.bf16.gmra.mrb[0].mxu0 %v268
    %v636 = vpop.f32.mrb[0].mxu0
    %v637 = vadd.f32 0.0, %v636
    %v638 = vpop.f32.mrb[0].mxu0
    %v639 = vpop.f32.mrb[0].mxu0
    %v640 = vadd.f32 0.0, %v639
    %v641 = vpop.f32.mrb[0].mxu0
    %642 = vdwg.mxu0
    %v643 = vadd.f32 %v424, %v637
    %v644 = vadd.f32 %v425, %v640
    %v645 = vld [vmem:[#allocation5 + $0xc0] sm:$0xf]
    %v646 = vld [vmem:[#allocation5 + $0xc4] sm:$0xf]
    %v647 = vld [vmem:[#allocation5 + $0xc8] sm:$0xf]
    %v648 = vld [vmem:[#allocation5 + $0xcc] sm:$0xf]
    %v649 = vld [vmem:[#allocation5 + $0xd0] sm:$0xf]
    %v650 = vld [vmem:[#allocation5 + $0xd4] sm:$0xf]
    %v651 = vld [vmem:[#allocation5 + $0xd8] sm:$0xf]
    %v652 = vld [vmem:[#allocation5 + $0xdc] sm:$0xf]
    %v653 = vld [vmem:[#allocation5 + $0xe0] sm:$0xf]
    %v654 = vld [vmem:[#allocation5 + $0xe4] sm:$0xf]
    %v655 = vld [vmem:[#allocation5 + $0xe8] sm:$0xf]
    %v656 = vld [vmem:[#allocation5 + $0xec] sm:$0xf]
    %v657 = vld [vmem:[#allocation5 + $0xf0] sm:$0xf]
    %v658 = vld [vmem:[#allocation5 + $0xf4] sm:$0xf]
    %v659 = vld [vmem:[#allocation5 + $0xf8] sm:$0xf]
    %v660 = vld [vmem:[#allocation5 + $0xfc] sm:$0xf]
    %v661 = vld [vmem:[%s6 + $0x3] sm:$0x1]
    %v662 = vpack.c.bf16 %v644, %v643
    %v663 = vlaneseq
    %v664 = vshrl.u32 %v663, 7
    %v665 = vsub.s32 0, %v664
    %v666 = vrot.slane %v661, %v665
    %v683 = vunpack.c.l.b16 %v645
    %v684 = vunpack.c.l.b16 %v646
    %v685 = vunpack.c.l.b16 %v647
    %v686 = vunpack.c.l.b16 %v648
    %v687 = vunpack.c.l.b16 %v649
    %v688 = vunpack.c.l.b16 %v650
    %v689 = vunpack.c.l.b16 %v651
    %v690 = vunpack.c.l.b16 %v652
    %v691 = vunpack.c.l.b16 %v653
    %v692 = vunpack.c.l.b16 %v654
    %v693 = vunpack.c.l.b16 %v655
    %v694 = vunpack.c.l.b16 %v656
    %v695 = vunpack.c.l.b16 %v657
    %v696 = vunpack.c.l.b16 %v658
    %v697 = vunpack.c.l.b16 %v659
    %v698 = vunpack.c.l.b16 %v660
    %v699 = vpack.c.b16 %v684, %v683
    %v700 = vpack.c.b16 %v686, %v685
    %v701 = vpack.c.b16 %v688, %v687
    %v702 = vpack.c.b16 %v690, %v689
    %v703 = vpack.c.b16 %v692, %v691
    %v704 = vpack.c.b16 %v694, %v693
    %v705 = vpack.c.b16 %v696, %v695
    %v706 = vpack.c.b16 %v698, %v697
    %715 = vmatprep.subr.bf16.mxu0 0
    %716 = vmatpush1.bf16.msra.mxu0 %v699
    %717 = vmatprep.subr.bf16.mxu0 0
    %718 = vmatpush1.bf16.msra.mxu0 %v700
    %719 = vmatprep.subr.bf16.mxu0 0
    %720 = vmatpush1.bf16.msra.mxu0 %v701
    %721 = vmatprep.subr.bf16.mxu0 0
    %722 = vmatpush1.bf16.msra.mxu0 %v702
    %723 = vmatprep.subr.bf16.mxu0 0
    %724 = vmatpush1.bf16.msra.mxu0 %v703
    %725 = vmatprep.subr.bf16.mxu0 0
    %726 = vmatpush1.bf16.msra.mxu0 %v704
    %727 = vmatprep.subr.bf16.mxu0 0
    %728 = vmatpush1.bf16.msra.mxu0 %v705
    %729 = vmatprep.subr.bf16.mxu0 0
    %730 = vmatpush1.bf16.msra.mxu0 %v706
    %731 = vmatprep.subr.bf16.mxu0 0
    %732 = vmatpush1.bf16.msra.mxu0 0
    %733 = vmatprep.subr.bf16.mxu0 0
    %734 = vmatpush1.bf16.msra.mxu0 0
    %735 = vmatprep.subr.bf16.mxu0 0
    %736 = vmatpush1.bf16.msra.mxu0 0
    %737 = vmatprep.subr.bf16.mxu0 0
    %738 = vmatpush1.bf16.msra.mxu0 0
    %739 = vmatprep.subr.bf16.mxu0 0
    %740 = vmatpush1.bf16.msra.mxu0 0
    %741 = vmatprep.subr.bf16.mxu0 0
    %742 = vmatpush1.bf16.msra.mxu0 0
    %743 = vmatprep.subr.bf16.mxu0 0
    %744 = vmatpush1.bf16.msra.mxu0 0
    %745 = vmatprep.subr.bf16.mxu0 0
    %746 = vmatpush1.bf16.msra.mxu0 0
    %747 = vmatprep.mubr.bf16.mxu0 0
    %748 = vmatmul.mubr.bf16.gmra.mrb[0].mxu0 %v662
    %v749 = vpop.f32.mrb[0].mxu0
    %v750 = vadd.f32 %v666, %v749
    %v751 = vpop.f32.mrb[0].mxu0
    %v752 = vpop.f32.mrb[0].mxu0
    %v753 = vadd.f32 %v666, %v752
    %v754 = vpop.f32.mrb[0].mxu0
    %755 = vdwg.mxu0
    %v756 = vmax.f32 %v750, 0.0
    %v757 = vmax.f32 %v753, 0.0
    %v758 = vpack.c.bf16 %v757, %v756
    %759 = vmatprep.subr.bf16.mxu0 0
    %760 = vmatpush1.bf16.msra.mxu0 %v758
    %761 = vmatprep.subr.bf16.mxu0 0
    %762 = vmatpush1.bf16.msra.mxu0 0
    %763 = vmatprep.subr.bf16.mxu0 0
    %764 = vmatpush1.bf16.msra.mxu0 0
    %765 = vmatprep.subr.bf16.mxu0 0
    %766 = vmatpush1.bf16.msra.mxu0 0
    %767 = vmatprep.subr.bf16.mxu0 0
    %768 = vmatpush1.bf16.msra.mxu0 0
    %769 = vmatprep.subr.bf16.mxu0 0
    %770 = vmatpush1.bf16.msra.mxu0 0
    %771 = vmatprep.subr.bf16.mxu0 0
    %772 = vmatpush1.bf16.msra.mxu0 0
    %773 = vmatprep.subr.bf16.mxu0 0
    %774 = vmatpush1.bf16.msra.mxu0 0
    %775 = vmatprep.subr.bf16.mxu0 0
    %776 = vmatpush1.bf16.msra.mxu0 0
    %777 = vmatprep.subr.bf16.mxu0 0
    %778 = vmatpush1.bf16.msra.mxu0 0
    %779 = vmatprep.subr.bf16.mxu0 0
    %780 = vmatpush1.bf16.msra.mxu0 0
    %781 = vmatprep.subr.bf16.mxu0 0
    %782 = vmatpush1.bf16.msra.mxu0 0
    %783 = vmatprep.subr.bf16.mxu0 0
    %784 = vmatpush1.bf16.msra.mxu0 0
    %785 = vmatprep.subr.bf16.mxu0 0
    %786 = vmatpush1.bf16.msra.mxu0 0
    %787 = vmatprep.subr.bf16.mxu0 0
    %788 = vmatpush1.bf16.msra.mxu0 0
    %789 = vmatprep.subr.bf16.mxu0 0
    %790 = vmatpush1.bf16.msra.mxu0 0
    %791 = vmatprep.mubr.bf16.mxu0 0
    %792 = vmatmul.mubr.bf16.gmra.mrb[0].mxu0 %v199
    %v793 = vpop.f32.mrb[0].mxu0
    %v794 = vadd.f32 %v532, %v793
    %v795 = vpop.f32.mrb[0].mxu0
    %v796 = vpop.f32.mrb[0].mxu0
    %v797 = vadd.f32 %v535, %v796
    %v798 = vpop.f32.mrb[0].mxu0
    %799 = vmatprep.mubr.bf16.mxu0 0
    %800 = vmatmul.mubr.bf16.gmra.mrb[0].mxu0 %v202
    %v801 = vpop.f32.mrb[0].mxu0
    %v802 = vadd.f32 %v540, %v801
    %v803 = vpop.f32.mrb[0].mxu0
    %v804 = vpop.f32.mrb[0].mxu0
    %v805 = vadd.f32 %v543, %v804
    %v806 = vpop.f32.mrb[0].mxu0
    %807 = vdwg.mxu0
    %v808 = vmax.f32 %v794, 0.0
    %v809 = vmax.f32 %v797, 0.0
    %v810 = vmax.f32 %v802, 0.0
    %v811 = vmax.f32 %v805, 0.0
    %v812 = vpack.c.bf16 %v809, %v808
    %v813 = vpack.c.bf16 %v811, %v810
    %814 = vmatprep.subr.bf16.mxu0 0
    %815 = vmatpush1.bf16.msra.mxu0 %v812
    %816 = vmatprep.subr.bf16.mxu0 0
    %817 = vmatpush1.bf16.msra.mxu0 %v813
    %818 = vmatprep.subr.bf16.mxu0 0
    %819 = vmatpush1.bf16.msra.mxu0 0
    %820 = vmatprep.subr.bf16.mxu0 0
    %821 = vmatpush1.bf16.msra.mxu0 0
    %822 = vmatprep.subr.bf16.mxu0 0
    %823 = vmatpush1.bf16.msra.mxu0 0
    %824 = vmatprep.subr.bf16.mxu0 0
    %825 = vmatpush1.bf16.msra.mxu0 0
    %826 = vmatprep.subr.bf16.mxu0 0
    %827 = vmatpush1.bf16.msra.mxu0 0
    %828 = vmatprep.subr.bf16.mxu0 0
    %829 = vmatpush1.bf16.msra.mxu0 0
    %830 = vmatprep.subr.bf16.mxu0 0
    %831 = vmatpush1.bf16.msra.mxu0 0
    %832 = vmatprep.subr.bf16.mxu0 0
    %833 = vmatpush1.bf16.msra.mxu0 0
    %834 = vmatprep.subr.bf16.mxu0 0
    %835 = vmatpush1.bf16.msra.mxu0 0
    %836 = vmatprep.subr.bf16.mxu0 0
    %837 = vmatpush1.bf16.msra.mxu0 0
    %838 = vmatprep.subr.bf16.mxu0 0
    %839 = vmatpush1.bf16.msra.mxu0 0
    %840 = vmatprep.subr.bf16.mxu0 0
    %841 = vmatpush1.bf16.msra.mxu0 0
    %842 = vmatprep.subr.bf16.mxu0 0
    %843 = vmatpush1.bf16.msra.mxu0 0
    %844 = vmatprep.subr.bf16.mxu0 0
    %845 = vmatpush1.bf16.msra.mxu0 0
    %846 = vmatprep.mubr.bf16.mxu0 0
    %847 = vmatmul.mubr.bf16.gmra.mrb[0].mxu0 %v268
    %v848 = vpop.f32.mrb[0].mxu0
    %v849 = vadd.f32 0.0, %v848
    %v850 = vpop.f32.mrb[0].mxu0
    %v851 = vpop.f32.mrb[0].mxu0
    %v852 = vadd.f32 0.0, %v851
    %v853 = vpop.f32.mrb[0].mxu0
    %854 = vdwg.mxu0
    %v855 = vadd.f32 %v756, %v849
    %v856 = vadd.f32 %v757, %v852
    %v857 = vld [vmem:[#allocation5 + $0x100] sm:$0xf]
    %v858 = vld [vmem:[#allocation5 + $0x104] sm:$0xf]
    %v859 = vld [vmem:[#allocation5 + $0x108] sm:$0xf]
    %v860 = vld [vmem:[#allocation5 + $0x10c] sm:$0xf]
    %v861 = vld [vmem:[#allocation5 + $0x110] sm:$0xf]
    %v862 = vld [vmem:[#allocation5 + $0x114] sm:$0xf]
    %v863 = vld [vmem:[#allocation5 + $0x118] sm:$0xf]
    %v864 = vld [vmem:[#allocation5 + $0x11c] sm:$0xf]
    %v865 = vld [vmem:[#allocation5 + $0x120] sm:$0xf]
    %v866 = vld [vmem:[#allocation5 + $0x124] sm:$0xf]
    %v867 = vld [vmem:[#allocation5 + $0x128] sm:$0xf]
    %v868 = vld [vmem:[#allocation5 + $0x12c] sm:$0xf]
    %v869 = vld [vmem:[#allocation5 + $0x130] sm:$0xf]
    %v870 = vld [vmem:[#allocation5 + $0x134] sm:$0xf]
    %v871 = vld [vmem:[#allocation5 + $0x138] sm:$0xf]
    %v872 = vld [vmem:[#allocation5 + $0x13c] sm:$0xf]
    %v873 = vld [vmem:[%s6 + $0x4] sm:$0x1]
    %v874 = vpack.c.bf16 %v856, %v855
    %v875 = vlaneseq
    %v876 = vshrl.u32 %v875, 7
    %v877 = vsub.s32 0, %v876
    %v878 = vrot.slane %v873, %v877
    %v895 = vunpack.c.l.b16 %v857
    %v896 = vunpack.c.l.b16 %v858
    %v897 = vunpack.c.l.b16 %v859
    %v898 = vunpack.c.l.b16 %v860
    %v899 = vunpack.c.l.b16 %v861
    %v900 = vunpack.c.l.b16 %v862
    %v901 = vunpack.c.l.b16 %v863
    %v902 = vunpack.c.l.b16 %v864
    %v903 = vunpack.c.l.b16 %v865
    %v904 = vunpack.c.l.b16 %v866
    %v905 = vunpack.c.l.b16 %v867
    %v906 = vunpack.c.l.b16 %v868
    %v907 = vunpack.c.l.b16 %v869
    %v908 = vunpack.c.l.b16 %v870
    %v909 = vunpack.c.l.b16 %v871
    %v910 = vunpack.c.l.b16 %v872
    %v911 = vpack.c.b16 %v896, %v895
    %v912 = vpack.c.b16 %v898, %v897
    %v913 = vpack.c.b16 %v900, %v899
    %v914 = vpack.c.b16 %v902, %v901
    %v915 = vpack.c.b16 %v904, %v903
    %v916 = vpack.c.b16 %v906, %v905
    %v917 = vpack.c.b16 %v908, %v907
    %v918 = vpack.c.b16 %v910, %v909
    %927 = vmatprep.subr.bf16.mxu0 0
    %928 = vmatpush1.bf16.msra.mxu0 %v911
    %929 = vmatprep.subr.bf16.mxu0 0
    %930 = vmatpush1.bf16.msra.mxu0 %v912
    %931 = vmatprep.subr.bf16.mxu0 0
    %932 = vmatpush1.bf16.msra.mxu0 %v913
    %933 = vmatprep.subr.bf16.mxu0 0
    %934 = vmatpush1.bf16.msra.mxu0 %v914
    %935 = vmatprep.subr.bf16.mxu0 0
    %936 = vmatpush1.bf16.msra.mxu0 %v915
    %937 = vmatprep.subr.bf16.mxu0 0
    %938 = vmatpush1.bf16.msra.mxu0 %v916
    %939 = vmatprep.subr.bf16.mxu0 0
    %940 = vmatpush1.bf16.msra.mxu0 %v917
    %941 = vmatprep.subr.bf16.mxu0 0
    %942 = vmatpush1.bf16.msra.mxu0 %v918
    %943 = vmatprep.subr.bf16.mxu0 0
    %944 = vmatpush1.bf16.msra.mxu0 0
    %945 = vmatprep.subr.bf16.mxu0 0
    %946 = vmatpush1.bf16.msra.mxu0 0
    %947 = vmatprep.subr.bf16.mxu0 0
    %948 = vmatpush1.bf16.msra.mxu0 0
    %949 = vmatprep.subr.bf16.mxu0 0
    %950 = vmatpush1.bf16.msra.mxu0 0
    %951 = vmatprep.subr.bf16.mxu0 0
    %952 = vmatpush1.bf16.msra.mxu0 0
    %953 = vmatprep.subr.bf16.mxu0 0
    %954 = vmatpush1.bf16.msra.mxu0 0
    %955 = vmatprep.subr.bf16.mxu0 0
    %956 = vmatpush1.bf16.msra.mxu0 0
    %957 = vmatprep.subr.bf16.mxu0 0
    %958 = vmatpush1.bf16.msra.mxu0 0
    %959 = vmatprep.mubr.bf16.mxu0 0
    %960 = vmatmul.mubr.bf16.gmra.mrb[0].mxu0 %v874
    %v961 = vpop.f32.mrb[0].mxu0
    %v962 = vadd.f32 %v878, %v961
    %v963 = vpop.f32.mrb[0].mxu0
    %v964 = vpop.f32.mrb[0].mxu0
    %v965 = vadd.f32 %v878, %v964
    %v966 = vpop.f32.mrb[0].mxu0
    %967 = vdwg.mxu0
    %v968 = vld [vmem:[%s4] sm:$0xff]
    %v970 = vsel %vm197, %v968, 0
    %972 = vmatprep.subr.mxu0 0.0
    %973 = vmatpush1.msra.mxu0 %v962
    %974 = vmatprep.subr.mxu0 0.0
    %975 = vmatpush1.msra.mxu0 %v965
    %976 = vmatprep.subr.mxu0 0.0
    %977 = vmatpush1.msra.mxu0 0.0
    %978 = vmatprep.subr.mxu0 0.0
    %979 = vmatpush1.msra.mxu0 0.0
    %980 = vmatprep.subr.mxu0 0.0
    %981 = vmatpush1.msra.mxu0 0.0
    %982 = vmatprep.subr.mxu0 0.0
    %983 = vmatpush1.msra.mxu0 0.0
    %984 = vmatprep.subr.mxu0 0.0
    %985 = vmatpush1.msra.mxu0 0.0
    %986 = vmatprep.subr.mxu0 0.0
    %987 = vmatpush1.msra.mxu0 0.0
    %988 = vmatprep.subr.mxu0 0.0
    %989 = vmatpush1.msra.mxu0 0.0
    %990 = vmatprep.subr.mxu0 0.0
    %991 = vmatpush1.msra.mxu0 0.0
    %992 = vmatprep.subr.mxu0 0.0
    %993 = vmatpush1.msra.mxu0 0.0
    %994 = vmatprep.subr.mxu0 0.0
    %995 = vmatpush1.msra.mxu0 0.0
    %996 = vmatprep.subr.mxu0 0.0
    %997 = vmatpush1.msra.mxu0 0.0
    %998 = vmatprep.subr.mxu0 0.0
    %999 = vmatpush1.msra.mxu0 0.0
    %1000 = vmatprep.subr.mxu0 0.0
    %1001 = vmatpush1.msra.mxu0 0.0
    %1002 = vmatprep.subr.mxu0 0.0
    %1003 = vmatpush1.msra.mxu0 0.0
    %1004 = vmatprep.subr.mxu0 0.0
    %1005 = vmatpush1.msra.mxu0 0.0
    %1006 = vmatprep.subr.mxu0 0.0
    %1007 = vmatpush1.msra.mxu0 0.0
    %1008 = vmatprep.subr.mxu0 0.0
    %1009 = vmatpush1.msra.mxu0 0.0
    %1010 = vmatprep.subr.mxu0 0.0
    %1011 = vmatpush1.msra.mxu0 0.0
    %1012 = vmatprep.subr.mxu0 0.0
    %1013 = vmatpush1.msra.mxu0 0.0
    %1014 = vmatprep.subr.mxu0 0.0
    %1015 = vmatpush1.msra.mxu0 0.0
    %1016 = vmatprep.subr.mxu0 0.0
    %1017 = vmatpush1.msra.mxu0 0.0
    %1018 = vmatprep.subr.mxu0 0.0
    %1019 = vmatpush1.msra.mxu0 0.0
    %1020 = vmatprep.subr.mxu0 0.0
    %1021 = vmatpush1.msra.mxu0 0.0
    %1022 = vmatprep.subr.mxu0 0.0
    %1023 = vmatpush1.msra.mxu0 0.0
    %1024 = vmatprep.subr.mxu0 0.0
    %1025 = vmatpush1.msra.mxu0 0.0
    %1026 = vmatprep.subr.mxu0 0.0
    %1027 = vmatpush1.msra.mxu0 0.0
    %1028 = vmatprep.subr.mxu0 0.0
    %1029 = vmatpush1.msra.mxu0 0.0
    %1030 = vmatprep.subr.mxu0 0.0
    %1031 = vmatpush1.msra.mxu0 0.0
    %1032 = vmatprep.subr.mxu0 0.0
    %1033 = vmatpush1.msra.mxu0 0.0
    %1034 = vmatprep.subr.mxu0 0.0
    %1035 = vmatpush1.msra.mxu0 0.0
    %1036 = vmatprep.mubr.f32.mxu0 0.0
    %1037 = vmatmul.mubr.f32.gmra.mrb[0].mxu0 %v970
    %v1038 = vpop.f32.mrb[0].mxu0
    %v1039 = vadd.f32 0.0, %v1038
    %v1040 = vpop.f32.mrb[0].mxu0
    %1041 = vdwg.mxu0
    %v1042 = vld [vmem:[#allocation5 + $0x140] sm:$0xf]
    %v1043 = vld [vmem:[#allocation5 + $0x144] sm:$0xf]
    %v1044 = vld [vmem:[#allocation5 + $0x148] sm:$0xf]
    %v1045 = vld [vmem:[#allocation5 + $0x14c] sm:$0xf]
    %v1046 = vld [vmem:[#allocation5 + $0x150] sm:$0xf]
    %v1047 = vld [vmem:[#allocation5 + $0x154] sm:$0xf]
    %v1048 = vld [vmem:[#allocation5 + $0x158] sm:$0xf]
    %v1049 = vld [vmem:[#allocation5 + $0x15c] sm:$0xf]
    %v1050 = vld [vmem:[#allocation5 + $0x160] sm:$0xf]
    %v1051 = vld [vmem:[#allocation5 + $0x164] sm:$0xf]
    %v1052 = vld [vmem:[#allocation5 + $0x168] sm:$0xf]
    %v1053 = vld [vmem:[#allocation5 + $0x16c] sm:$0xf]
    %v1054 = vld [vmem:[#allocation5 + $0x170] sm:$0xf]
    %v1055 = vld [vmem:[#allocation5 + $0x174] sm:$0xf]
    %v1056 = vld [vmem:[#allocation5 + $0x178] sm:$0xf]
    %v1057 = vld [vmem:[#allocation5 + $0x17c] sm:$0xf]
    %v1058 = vld [vmem:[%s6 + $0x5] sm:$0x1]
    %v1059 = vpack.c.bf16 %v1039, %v1039
    %v1060 = vlaneseq
    %v1061 = vshrl.u32 %v1060, 7
    %v1062 = vsub.s32 0, %v1061
    %v1063 = vrot.slane %v1058, %v1062
    %v1080 = vunpack.c.l.b16 %v1042
    %v1081 = vunpack.c.l.b16 %v1043
    %v1082 = vunpack.c.l.b16 %v1044
    %v1083 = vunpack.c.l.b16 %v1045
    %v1084 = vunpack.c.l.b16 %v1046
    %v1085 = vunpack.c.l.b16 %v1047
    %v1086 = vunpack.c.l.b16 %v1048
    %v1087 = vunpack.c.l.b16 %v1049
    %v1088 = vunpack.c.l.b16 %v1050
    %v1089 = vunpack.c.l.b16 %v1051
    %v1090 = vunpack.c.l.b16 %v1052
    %v1091 = vunpack.c.l.b16 %v1053
    %v1092 = vunpack.c.l.b16 %v1054
    %v1093 = vunpack.c.l.b16 %v1055
    %v1094 = vunpack.c.l.b16 %v1056
    %v1095 = vunpack.c.l.b16 %v1057
    %v1096 = vpack.c.b16 %v1081, %v1080
    %v1097 = vpack.c.b16 %v1083, %v1082
    %v1098 = vpack.c.b16 %v1085, %v1084
    %v1099 = vpack.c.b16 %v1087, %v1086
    %v1100 = vpack.c.b16 %v1089, %v1088
    %v1101 = vpack.c.b16 %v1091, %v1090
    %v1102 = vpack.c.b16 %v1093, %v1092
    %v1103 = vpack.c.b16 %v1095, %v1094
    %1112 = vmatprep.subr.bf16.mxu0 0
    %1113 = vmatpush1.bf16.msra.mxu0 %v1096
    %1114 = vmatprep.subr.bf16.mxu0 0
    %1115 = vmatpush1.bf16.msra.mxu0 %v1097
    %1116 = vmatprep.subr.bf16.mxu0 0
    %1117 = vmatpush1.bf16.msra.mxu0 %v1098
    %1118 = vmatprep.subr.bf16.mxu0 0
    %1119 = vmatpush1.bf16.msra.mxu0 %v1099
    %1120 = vmatprep.subr.bf16.mxu0 0
    %1121 = vmatpush1.bf16.msra.mxu0 %v1100
    %1122 = vmatprep.subr.bf16.mxu0 0
    %1123 = vmatpush1.bf16.msra.mxu0 %v1101
    %1124 = vmatprep.subr.bf16.mxu0 0
    %1125 = vmatpush1.bf16.msra.mxu0 %v1102
    %1126 = vmatprep.subr.bf16.mxu0 0
    %1127 = vmatpush1.bf16.msra.mxu0 %v1103
    %1128 = vmatprep.subr.bf16.mxu0 0
    %1129 = vmatpush1.bf16.msra.mxu0 0
    %1130 = vmatprep.subr.bf16.mxu0 0
    %1131 = vmatpush1.bf16.msra.mxu0 0
    %1132 = vmatprep.subr.bf16.mxu0 0
    %1133 = vmatpush1.bf16.msra.mxu0 0
    %1134 = vmatprep.subr.bf16.mxu0 0
    %1135 = vmatpush1.bf16.msra.mxu0 0
    %1136 = vmatprep.subr.bf16.mxu0 0
    %1137 = vmatpush1.bf16.msra.mxu0 0
    %1138 = vmatprep.subr.bf16.mxu0 0
    %1139 = vmatpush1.bf16.msra.mxu0 0
    %1140 = vmatprep.subr.bf16.mxu0 0
    %1141 = vmatpush1.bf16.msra.mxu0 0
    %1142 = vmatprep.subr.bf16.mxu0 0
    %1143 = vmatpush1.bf16.msra.mxu0 0
    %1144 = vmatprep.mubr.bf16.mxu0 0
    %1145 = vmatmul.mubr.bf16.gmra.mrb[0].mxu0 %v1059
    %v1146 = vpop.f32.mrb[0].mxu0
    %v1147 = vadd.f32 %v1063, %v1146
    %v1148 = vpop.f32.mrb[0].mxu0
    %v1149 = vpop.f32.mrb[0].mxu0
    %v1150 = vpop.f32.mrb[0].mxu0
    %1151 = vdwg.mxu0
    %v1152 = vmax.f32 %v1147, 0.0
    %v1153 = vld [vmem:[#allocation5 + $0x180] sm:$0xf]
    %v1154 = vld [vmem:[#allocation5 + $0x184] sm:$0xf]
    %v1155 = vld [vmem:[#allocation5 + $0x188] sm:$0xf]
    %v1156 = vld [vmem:[#allocation5 + $0x18c] sm:$0xf]
    %v1157 = vld [vmem:[#allocation5 + $0x190] sm:$0xf]
    %v1158 = vld [vmem:[#allocation5 + $0x194] sm:$0xf]
    %v1159 = vld [vmem:[#allocation5 + $0x198] sm:$0xf]
    %v1160 = vld [vmem:[#allocation5 + $0x19c] sm:$0xf]
    %v1161 = vld [vmem:[#allocation5 + $0x1a0] sm:$0xf]
    %v1162 = vld [vmem:[#allocation5 + $0x1a4] sm:$0xf]
    %v1163 = vld [vmem:[#allocation5 + $0x1a8] sm:$0xf]
    %v1164 = vld [vmem:[#allocation5 + $0x1ac] sm:$0xf]
    %v1165 = vld [vmem:[#allocation5 + $0x1b0] sm:$0xf]
    %v1166 = vld [vmem:[#allocation5 + $0x1b4] sm:$0xf]
    %v1167 = vld [vmem:[#allocation5 + $0x1b8] sm:$0xf]
    %v1168 = vld [vmem:[#allocation5 + $0x1bc] sm:$0xf]
    %v1169 = vld [vmem:[%s6 + $0x6] sm:$0x1]
    %v1170 = vpack.c.bf16 %v1152, %v1152
    %v1171 = vlaneseq
    %v1172 = vshrl.u32 %v1171, 7
    %v1173 = vsub.s32 0, %v1172
    %v1174 = vrot.slane %v1169, %v1173
    %v1191 = vunpack.c.l.b16 %v1153
    %v1192 = vunpack.c.l.b16 %v1154
    %v1193 = vunpack.c.l.b16 %v1155
    %v1194 = vunpack.c.l.b16 %v1156
    %v1195 = vunpack.c.l.b16 %v1157
    %v1196 = vunpack.c.l.b16 %v1158
    %v1197 = vunpack.c.l.b16 %v1159
    %v1198 = vunpack.c.l.b16 %v1160
    %v1199 = vunpack.c.l.b16 %v1161
    %v1200 = vunpack.c.l.b16 %v1162
    %v1201 = vunpack.c.l.b16 %v1163
    %v1202 = vunpack.c.l.b16 %v1164
    %v1203 = vunpack.c.l.b16 %v1165
    %v1204 = vunpack.c.l.b16 %v1166
    %v1205 = vunpack.c.l.b16 %v1167
    %v1206 = vunpack.c.l.b16 %v1168
    %v1207 = vpack.c.b16 %v1192, %v1191
    %v1208 = vpack.c.b16 %v1194, %v1193
    %v1209 = vpack.c.b16 %v1196, %v1195
    %v1210 = vpack.c.b16 %v1198, %v1197
    %v1211 = vpack.c.b16 %v1200, %v1199
    %v1212 = vpack.c.b16 %v1202, %v1201
    %v1213 = vpack.c.b16 %v1204, %v1203
    %v1214 = vpack.c.b16 %v1206, %v1205
    %1223 = vmatprep.subr.bf16.mxu0 0
    %1224 = vmatpush1.bf16.msra.mxu0 %v1207
    %1225 = vmatprep.subr.bf16.mxu0 0
    %1226 = vmatpush1.bf16.msra.mxu0 %v1208
    %1227 = vmatprep.subr.bf16.mxu0 0
    %1228 = vmatpush1.bf16.msra.mxu0 %v1209
    %1229 = vmatprep.subr.bf16.mxu0 0
    %1230 = vmatpush1.bf16.msra.mxu0 %v1210
    %1231 = vmatprep.subr.bf16.mxu0 0
    %1232 = vmatpush1.bf16.msra.mxu0 %v1211
    %1233 = vmatprep.subr.bf16.mxu0 0
    %1234 = vmatpush1.bf16.msra.mxu0 %v1212
    %1235 = vmatprep.subr.bf16.mxu0 0
    %1236 = vmatpush1.bf16.msra.mxu0 %v1213
    %1237 = vmatprep.subr.bf16.mxu0 0
    %1238 = vmatpush1.bf16.msra.mxu0 %v1214
    %1239 = vmatprep.subr.bf16.mxu0 0
    %1240 = vmatpush1.bf16.msra.mxu0 0
    %1241 = vmatprep.subr.bf16.mxu0 0
    %1242 = vmatpush1.bf16.msra.mxu0 0
    %1243 = vmatprep.subr.bf16.mxu0 0
    %1244 = vmatpush1.bf16.msra.mxu0 0
    %1245 = vmatprep.subr.bf16.mxu0 0
    %1246 = vmatpush1.bf16.msra.mxu0 0
    %1247 = vmatprep.subr.bf16.mxu0 0
    %1248 = vmatpush1.bf16.msra.mxu0 0
    %1249 = vmatprep.subr.bf16.mxu0 0
    %1250 = vmatpush1.bf16.msra.mxu0 0
    %1251 = vmatprep.subr.bf16.mxu0 0
    %1252 = vmatpush1.bf16.msra.mxu0 0
    %1253 = vmatprep.subr.bf16.mxu0 0
    %1254 = vmatpush1.bf16.msra.mxu0 0
    %1255 = vmatprep.mubr.bf16.mxu0 0
    %1256 = vmatmul.mubr.bf16.gmra.mrb[0].mxu0 %v1170
    %v1257 = vpop.f32.mrb[0].mxu0
    %v1258 = vadd.f32 %v1174, %v1257
    %v1259 = vpop.f32.mrb[0].mxu0
    %v1260 = vpop.f32.mrb[0].mxu0
    %v1261 = vpop.f32.mrb[0].mxu0
    %1262 = vdwg.mxu0
    %1263 = vst [vmem:[#allocation7] sm:$0xff] %v1258
    // Predicated region
    $region38: #{tpu_custom_call.1} parent=1 // pred_check
      _
    $region39: #{tpu_custom_call.1} parent=1 // pred_check_branch
      %1265 = sbr.rel (0) target = $region41
    $region40: #{tpu_custom_call.1} parent=1 // pred_region
      %s1267 = ssub.s32 128, 128
      %1268 = vsyncadd [#allocation4], %s1267
      %s1270 = sshll.u32 [#allocation7], 4
      %s1271 = int_to_ptr.vmem [resolvable:$true] %s1270
      %1273 = dma.vmem_to_hbm [thread:$0]  %s1271, 128, %s7, [#allocation4]
    $region41: #{tpu_custom_call.1} parent=1 // pred_fallthru
      _
    // Predicated region
    $region42: #{tpu_custom_call.1} parent=1 // pred_check
      _
    $region43: #{tpu_custom_call.1} parent=1 // pred_check_branch
      %1275 = sbr.rel (0) target = $region45
    $region44: #{tpu_custom_call.1} parent=1 // pred_region
      %1276 = dma.done [#allocation4], 128
    $region45: #{tpu_custom_call.1} parent=1 // pred_fallthru
      _
    %1277 = vsyncpa [#allocation3], 1
    %1278 = vsyncpa [#allocation6], 1
    %1279 = vsyncpa [#allocation4], 1

</llo_original>
